<compile_context>
chip_gen: v6e
topology: v6e:2x2x1
jax: 0.10.0
libtpu: 0.0.40
codegen_flags: <defaults>
</compile_context>

<pallas_src>
import functools

import jax
import jax.numpy as jnp
from jax.experimental import pallas as pl
from jax.experimental.pallas import tpu as pltpu

UNK_IDX = 0                                  # default index for OOV tokens
_NO_MATCH = jnp.iinfo(jnp.int32).max         # "no match yet" sentinel (min-acc)
_VOCAB_PAD_KEY = -1                          # never equals a (non-negative) hash
_TOKEN_PAD_KEY = -2                          # padded token rows (discarded)


def _vocab_lookup_kernel(tok_ref, vocab_ref, out_ref, acc_ref, *, tv):
    """One (token tile, vocab tile) grid step.

    tok_ref   : (1, 1, TN) int32   token keys (lane-dense)
    vocab_ref : (TV, 1)    int32   vocab keys for this vocab tile (sublane axis)
    out_ref   : (1, 1, TN) int32   resolved indices (written at last vocab step)
    acc_ref   : (TV, TN)   int32   VMEM running-min accumulator
    """
    k = pl.program_id(1)

    @pl.when(k == 0)
    def _init():
        acc_ref[...] = jnp.full(acc_ref.shape, _NO_MATCH, acc_ref.dtype)

    toks = tok_ref[0]                       # (1, TN)
    vocab = vocab_ref[...]                  # (TV, 1)

    # Broadcast compare: every vocab key in this tile vs every token. (VPU)
    eq = vocab == toks                      # (TV, TN)
    # Global vocab row index for this tile (local iota offset by k*TV).
    row = jax.lax.broadcasted_iota(jnp.int32, eq.shape, 0) + k * tv
    cand = jnp.where(eq, row, _NO_MATCH)    # (TV, TN)
    # Elementwise running min across vocab tiles -> first-match index. (VPU)
    acc_ref[...] = jnp.minimum(acc_ref[...], cand)

    @pl.when(k == pl.num_programs(1) - 1)
    def _finalize():
        # Single cross-sublane reduce per token tile (XLU), then UNK fixup.
        hit = jnp.min(acc_ref[...], axis=0, keepdims=True)       # (1, TN)
        out_ref[0] = jnp.where(hit == _NO_MATCH, jnp.int32(UNK_IDX), hit)


def vocab_transform(token_keys: jax.Array, vocab_keys: jax.Array,
                    *, tn: int = 256, tv: int = 512) -> jax.Array:
    """token_keys: (N,) int32 hashed tokens; vocab_keys: (V,) int32 table.

    Returns (N,) int32 indices, equivalent to vocab.lookup_indices(tokens).
    """
    assert tn % 128 == 0, "token tile must be lane-dense (multiple of 128)"
    assert tv % 8 == 0, "vocab tile must be a multiple of the sublane count"

    n = token_keys.shape[0]
    v = vocab_keys.shape[0]

    n_pad = pl.cdiv(n, tn) * tn
    v_pad = pl.cdiv(v, tv) * tv
    n_tok_tiles = n_pad // tn
    n_vocab_tiles = v_pad // tv

    toks = jnp.full((n_pad,), _TOKEN_PAD_KEY, jnp.int32)
    toks = toks.at[:n].set(token_keys.astype(jnp.int32))
    vocab = jnp.full((v_pad,), _VOCAB_PAD_KEY, jnp.int32)
    vocab = vocab.at[:v].set(vocab_keys.astype(jnp.int32))

    toks3d = toks.reshape(n_tok_tiles, 1, tn)    # tokens on the lane axis
    vocab2d = vocab.reshape(v_pad, 1)            # vocab on the sublane axis

    out = pl.pallas_call(
        functools.partial(_vocab_lookup_kernel, tv=tv),
        out_shape=jax.ShapeDtypeStruct((n_tok_tiles, 1, tn), jnp.int32),
        grid=(n_tok_tiles, n_vocab_tiles),       # vocab (reduction) axis last
        in_specs=[
            pl.BlockSpec((1, 1, tn), lambda i, k: (i, 0, 0)),
            pl.BlockSpec((tv, 1), lambda i, k: (k, 0)),
        ],
        out_specs=pl.BlockSpec((1, 1, tn), lambda i, k: (i, 0, 0)),
        scratch_shapes=[pltpu.VMEM((tv, tn), jnp.int32)],
        compiler_params=pltpu.CompilerParams(
            dimension_semantics=("parallel", "arbitrary"),
            vmem_limit_bytes=32 * 1024 * 1024,
        ),
    )(toks3d, vocab2d)

    return out.reshape(n_pad)[:n]


if __name__ == "__main__":
    key = jax.random.PRNGKey(0)
    k_vocab, k_pick, k_oov = jax.random.split(key, 3)

    V = 1500   # vocab size  -> pads to 2048 (4 vocab tiles of 512)
    N = 300    # token count -> pads to 512  (2 token tiles of 256)

    # Deterministic "hash table": unique non-negative int32 keys per vocab
    # entry (stand-in for a host-side string -> int31 hash).
    vocab_keys = jax.random.permutation(
        k_vocab, jnp.arange(10_000, 10_000 + V, dtype=jnp.int32)
    )

    # Mostly in-vocab tokens, with ~10% OOV (keys < 10_000 never occur in the
    # vocab table, so they are guaranteed out-of-vocabulary).
    picked = jax.random.randint(k_pick, (N,), 0, V)
    token_keys = vocab_keys[picked]
    oov_pos = jax.random.randint(k_oov, (N // 10,), 0, N)
    token_keys = token_keys.at[oov_pos].set(
        jnp.arange(oov_pos.shape[0], dtype=jnp.int32) + 7
    )

    idx = vocab_transform(token_keys, vocab_keys)
    jax.block_until_ready(idx)

    # Reference check in plain JAX (first-match semantics, UNK for OOV).
    eq = token_keys[:, None] == vocab_keys[None, :]
    ref = jnp.where(
        eq.any(axis=1), jnp.argmax(eq, axis=1), UNK_IDX
    ).astype(jnp.int32)
    assert jnp.array_equal(idx, ref), (idx, ref)

    print("KERNEL_OK")
</pallas_src>

<mosaic_0001>
module attributes {stable_mosaic.version = 11 : i64} {
  func.func @_vocab_lookup_kernel(%arg0: i32, %arg1: i32, %arg2: memref<1x1x256xi32, #tpu.memory_space<vmem>>, %arg3: memref<512x1xi32, #tpu.memory_space<vmem>>, %arg4: memref<1x1x256xi32, #tpu.memory_space<vmem>>, %arg5: memref<512x256xi32, #tpu.memory_space<vmem>>) attributes {dimension_semantics = [#tpu.dimension_semantics<parallel>, #tpu.dimension_semantics<arbitrary>], iteration_bounds = array<i64: 2, 3>, scalar_prefetch = 0 : i64, scratch_operands = 1 : i64, tpu.core_type = #tpu.core_type<tc>, window_params = [{transform_indices = @transform_0, window_bounds = array<i64: 1, 1, 256>}, {transform_indices = @transform_1, window_bounds = array<i64: 512, 1>}, {transform_indices = @transform_2, window_bounds = array<i64: 1, 1, 256>}]} {
    %c0_i32 = arith.constant 0 : i32
    %0 = arith.cmpi eq, %arg1, %c0_i32 : i32
    %1 = arith.extui %0 : i1 to i32
    %c0_i32_0 = arith.constant 0 : i32
    %2 = arith.cmpi ne, %1, %c0_i32_0 : i32
    scf.if %2 {
      %c2147483647_i32_10 = arith.constant 2147483647 : i32
      %21 = vector.broadcast %c2147483647_i32_10 : i32 to vector<512x256xi32>
      %c0_11 = arith.constant 0 : index
      %c0_12 = arith.constant 0 : index
      %22 = vector.load %arg5[%c0_11, %c0_12] : memref<512x256xi32, #tpu.memory_space<vmem>>, vector<512x256xi32>
      tpu.vector_store %arg5[%c0_11, %c0_12], %21 {strides = array<i32>} : memref<512x256xi32, #tpu.memory_space<vmem>>, vector<512x256xi32>,
    } else {
    }
    %c0 = arith.constant 0 : index
    %c0_1 = arith.constant 0 : index
    %c0_2 = arith.constant 0 : index
    %3 = vector.load %arg2[%c0, %c0_1, %c0_2] : memref<1x1x256xi32, #tpu.memory_space<vmem>>, vector<1x1x256xi32>
    %4 = vector.shape_cast %3 : vector<1x1x256xi32> to vector<1x256xi32>
    %c0_3 = arith.constant 0 : index
    %c0_4 = arith.constant 0 : index
    %5 = vector.load %arg3[%c0_3, %c0_4] : memref<512x1xi32, #tpu.memory_space<vmem>>, vector<512x1xi32>
    %6 = vector.broadcast %5 : vector<512x1xi32> to vector<512x256xi32>
    %7 = vector.broadcast %4 : vector<1x256xi32> to vector<512x256xi32>
    %8 = arith.cmpi eq, %6, %7 : vector<512x256xi32>
    %9 = tpu.iota {dimensions = array<i32: 0>} : vector<512x256xi32>
    %c512_i32 = arith.constant 512 : i32
    %10 = arith.muli %arg1, %c512_i32 : i32
    %11 = vector.broadcast %10 : i32 to vector<512x256xi32>
    %12 = arith.addi %9, %11 : vector<512x256xi32>
    %c2147483647_i32 = arith.constant 2147483647 : i32
    %13 = vector.broadcast %c2147483647_i32 : i32 to vector<512x256xi32>
    %14 = arith.select %8, %12, %13 : vector<512x256xi1>, vector<512x256xi32>
    %c0_5 = arith.constant 0 : index
    %c0_6 = arith.constant 0 : index
    %15 = vector.load %arg5[%c0_5, %c0_6] : memref<512x256xi32, #tpu.memory_space<vmem>>, vector<512x256xi32>
    %16 = arith.minsi %15, %14 : vector<512x256xi32>
    %c0_7 = arith.constant 0 : index
    %c0_8 = arith.constant 0 : index
    %17 = vector.load %arg5[%c0_7, %c0_8] : memref<512x256xi32, #tpu.memory_space<vmem>>, vector<512x256xi32>
    tpu.vector_store %arg5[%c0_7, %c0_8], %16 {strides = array<i32>} : memref<512x256xi32, #tpu.memory_space<vmem>>, vector<512x256xi32>,
    %c2_i32 = arith.constant 2 : i32
    %18 = arith.cmpi eq, %arg1, %c2_i32 : i32
    %19 = arith.extui %18 : i1 to i32
    %c0_i32_9 = arith.constant 0 : i32
    %20 = arith.cmpi ne, %19, %c0_i32_9 : i32
    scf.if %20 {
      %c0_10 = arith.constant 0 : index
      %c0_11 = arith.constant 0 : index
      %21 = vector.load %arg5[%c0_10, %c0_11] : memref<512x256xi32, #tpu.memory_space<vmem>>, vector<512x256xi32>
      %cst = arith.constant dense<2147483647> : vector<256xi32>
      %22 = vector.multi_reduction <minsi>, %21, %cst [0] : vector<512x256xi32> to vector<256xi32>
      %23 = vector.shape_cast %22 : vector<256xi32> to vector<1x256xi32>
      %c2147483647_i32_12 = arith.constant 2147483647 : i32
      %24 = vector.broadcast %c2147483647_i32_12 : i32 to vector<1x256xi32>
      %25 = arith.cmpi eq, %23, %24 : vector<1x256xi32>
      %c0_i32_13 = arith.constant 0 : i32
      %26 = vector.broadcast %c0_i32_13 : i32 to vector<1x256xi32>
      %27 = arith.select %25, %26, %23 : vector<1x256xi1>, vector<1x256xi32>
      %c0_14 = arith.constant 0 : index
      %c0_15 = arith.constant 0 : index
      %c0_16 = arith.constant 0 : index
      %28 = vector.load %arg4[%c0_14, %c0_15, %c0_16] : memref<1x1x256xi32, #tpu.memory_space<vmem>>, vector<1x1x256xi32>
      %29 = vector.shape_cast %28 : vector<1x1x256xi32> to vector<1x256xi32>
      %30 = vector.shape_cast %27 : vector<1x256xi32> to vector<1x1x256xi32>
      tpu.vector_store %arg4[%c0_14, %c0_15, %c0_16], %30 {strides = array<i32>} : memref<1x1x256xi32, #tpu.memory_space<vmem>>, vector<1x1x256xi32>,
    } else {
    }
    return
  }
  func.func @transform_0(%arg0: i32, %arg1: i32) -> (i32, i32, i32) {
    %c0_i32 = arith.constant 0 : i32
    %c0_i32_0 = arith.constant 0 : i32
    %c0_i32_1 = arith.constant 0 : i32
    return %arg0, %c0_i32, %c0_i32_0 : i32, i32, i32
  }
  func.func @transform_1(%arg0: i32, %arg1: i32) -> (i32, i32) {
    %c0_i32 = arith.constant 0 : i32
    %c0_i32_0 = arith.constant 0 : i32
    return %arg1, %c0_i32 : i32, i32
  }
  func.func @transform_2(%arg0: i32, %arg1: i32) -> (i32, i32, i32) {
    %c0_i32 = arith.constant 0 : i32
    %c0_i32_0 = arith.constant 0 : i32
    %c0_i32_1 = arith.constant 0 : i32
    return %arg0, %c0_i32, %c0_i32_0 : i32, i32, i32
  }
}

</mosaic_0001>

<llo_original>
// kernel: tpu_custom_call.1
$region0: #{tpu_custom_call.1}
  #allocation0 [shape = 'u32[]', space=smem, size = 0x4, offset = 0x4, fixed_abs, tag = 'smem constant byte address 0x4 - core index']
  #allocation1 [shape = 'u32[144,128]{1,0:T(1,128)}', space=vmem, size = 0x12000, scoped, tag = 'internal scratch']
  #allocation2 [shape = 's32[512,256]{1,0:T(8,128)}', space=vmem, size = 0x80000, scoped, tag = 'scratch operand']
  %s0 = inlined_call_operand.vmem [shape: s32[2,1,256], index: 0, kind: input, shape index: {}]
  %s1 = inlined_call_operand.vmem [shape: s32[1536,1], index: 1, kind: input, shape index: {}]
  %s2 = inlined_call_operand.hbm [shape: s32[2,1,256], index: 2, kind: output, shape index: {}]
  %s3 = sld [smem:[#allocation0]]
  $region49: #{tpu_custom_call.1} parent=0
    _
  %s5 = ssub.s32 1, %s3
  %s6 = scalar_select 0, %s5, %s3
  $region1: #{tpu_custom_call.1} parent=0
    #allocation3 [shape = 'u8[2048]{0}', space=vmem, size = 0x800, scoped, tag = 'output window, operand 0']
    #allocation4 [shape = 's32[2]{0}', space=sflag, size = 0x8, scoped, tag = 'scoped memory for tpu_custom_call.1']
    %7 = vsyncpa [#allocation4], 0
    %s8 = scalar_lea.sflag [#allocation4], 1
    %9 = vsyncpa %s8, 0
    loop: start=0, step=1, limit=8
    $region2: #{tpu_custom_call.1} parent=1 // loop_pre_header
      _
    $region3: #{tpu_custom_call.1} parent=1 // loop_header
      %s11 = sphi 0, %s15
      %p12 = scmp.ge.s32.totalorder %s11, 8
      %s18 = sphi 0, %s30
      %s19 = sphi 0, %s26
      %s20 = sphi 0, %s18
      %s21 = sphi 0, %s19
      %s22 = sphi 0, %s20
      %s23 = sphi 0, %s21
      %s33 = sphi 0, %s35
      %s36 = sphi 0, %s33
      %s37 = sphi 0, %s36
      %s53 = sphi 0, %s37
      %s59 = sphi 0, %s61
      %s62 = sphi 0, %s59
      %s63 = sphi 0, %s62
      %s79 = sphi 0, %s63
      %s85 = sphi 0, %s87
      %s88 = sphi 0, %s85
      %s89 = sphi 0, %s88
      %s105 = sphi 0, %s89
    $region4: #{tpu_custom_call.1} parent=1 // loop_header_branch
      %14 = sbr.rel (%p12) target = $region8
    $region5: #{tpu_custom_call.1} parent=1 // loop_body
      %s16 = ssub.s32 %s11, 1
      %s17 = ssub.s32 %s11, 2
      %s24 = sadd.s32 1, %s19
      %p25 = scmp.ge.s32.totalorder %s24, 3
      %s26 = scalar_select %p25, 0, %s24
      %s27 = sadd.s32 1, %s18
      %s28 = scalar_select %p25, %s27, %s18
      %p29 = scmp.ge.s32.totalorder %s28, 2
      %s30 = scalar_select %p29, 0, %s28
      %s31 = ssub.s32 %s18, %s30
      %p32 = scmp.eq.s32.totalorder %s31, 0
      %s34 = sadd.s32 %s33, 1
      %s35 = scalar_select %p32, %s33, %s34
      %p38 = pneg %p32
      %p39 = scmp.eq.s32.totalorder %s11, 5
      %p40 = por %p38, %p39
      %p41 = scmp.ne.s32.totalorder %s33, %s36
      %p42 = scmp.eq.s32.totalorder %s11, 0
      %p43 = por %p41, %p42
      %p44 = scmp.ne.s32.totalorder %s33, %s36
      %p45 = scmp.eq.s32.totalorder %s16, 5
      %p46 = por %p44, %p45
      %p47 = scmp.ne.s32.totalorder %s36, %s37
      %p48 = scmp.eq.s32.totalorder %s16, 0
      %p49 = por %p47, %p48
      %p50 = scmp.ne.s32.totalorder %s36, %s37
      %p51 = scmp.eq.s32.totalorder %s17, 5
      %p52 = por %p50, %p51
      %p54 = scmp.ne.s32.totalorder %s37, %s53
      %p55 = scmp.eq.s32.totalorder %s17, 0
      %p56 = por %p54, %p55
      %s57 = ssub.s32 %s19, %s26
      %p58 = scmp.eq.s32.totalorder %s57, 0
      %s60 = sadd.s32 %s59, 1
      %s61 = scalar_select %p58, %s59, %s60
      %p64 = pneg %p58
      %p65 = scmp.eq.s32.totalorder %s11, 5
      %p66 = por %p64, %p65
      %p67 = scmp.ne.s32.totalorder %s59, %s62
      %p68 = scmp.eq.s32.totalorder %s11, 0
      %p69 = por %p67, %p68
      %p70 = scmp.ne.s32.totalorder %s59, %s62
      %p71 = scmp.eq.s32.totalorder %s16, 5
      %p72 = por %p70, %p71
      %p73 = scmp.ne.s32.totalorder %s62, %s63
      %p74 = scmp.eq.s32.totalorder %s16, 0
      %p75 = por %p73, %p74
      %p76 = scmp.ne.s32.totalorder %s62, %s63
      %p77 = scmp.eq.s32.totalorder %s17, 5
      %p78 = por %p76, %p77
      %p80 = scmp.ne.s32.totalorder %s63, %s79
      %p81 = scmp.eq.s32.totalorder %s17, 0
      %p82 = por %p80, %p81
      %s83 = ssub.s32 %s18, %s30
      %p84 = scmp.eq.s32.totalorder %s83, 0
      %s86 = sadd.s32 %s85, 1
      %s87 = scalar_select %p84, %s85, %s86
      %p90 = pneg %p84
      %p91 = scmp.eq.s32.totalorder %s11, 5
      %p92 = por %p90, %p91
      %p93 = scmp.ne.s32.totalorder %s85, %s88
      %p94 = scmp.eq.s32.totalorder %s11, 0
      %p95 = por %p93, %p94
      %p96 = scmp.ne.s32.totalorder %s85, %s88
      %p97 = scmp.eq.s32.totalorder %s16, 5
      %p98 = por %p96, %p97
      %p99 = scmp.ne.s32.totalorder %s88, %s89
      %p100 = scmp.eq.s32.totalorder %s16, 0
      %p101 = por %p99, %p100
      %p102 = scmp.ne.s32.totalorder %s88, %s89
      %p103 = scmp.eq.s32.totalorder %s17, 5
      %p104 = por %p102, %p103
      %p106 = scmp.ne.s32.totalorder %s89, %s105
      %p107 = scmp.eq.s32.totalorder %s17, 0
      %p108 = por %p106, %p107
      %p109 = scmp.le.s32.totalorder 1, %s11
      %p110 = scmp.lt.s32.totalorder %s11, 7
      %p111 = pnand %p109, %p110
      %p112 = pneg %p111
      // Predicated region
      $region9: #{tpu_custom_call.1} parent=5 // pred_check
        _
      $region10: #{tpu_custom_call.1} parent=5 // pred_check_branch
        %114 = sbr.rel (%p111) target = $region12
      $region11: #{tpu_custom_call.1} parent=5 // pred_region
        %s115 = ssub.s32 %s11, 1
      $region12: #{tpu_custom_call.1} parent=5 // pred_fallthru
        _
      %p116 = scmp.lt.s32.totalorder %s11, 6
      // Predicated region
      $region13: #{tpu_custom_call.1} parent=5 // pred_check
        %p117 = pneg %p116
      $region14: #{tpu_custom_call.1} parent=5 // pred_check_branch
        %119 = sbr.rel (%p117) target = $region16
      $region15: #{tpu_custom_call.1} parent=5 // pred_region
        // Predicated region
        $region17: #{tpu_custom_call.1} parent=15 // pred_check
          %p120 = pneg %p43
        $region18: #{tpu_custom_call.1} parent=15 // pred_check_branch
          %122 = sbr.rel (%p120) target = $region20
        $region19: #{tpu_custom_call.1} parent=15 // pred_region
          %p123 = scmp.lt.s32.totalorder %s18, 1
          %s124 = scalar_select %p123, %s18, 1
          %s125 = smul.addr %s124, 2
          %s126 = scalar_lea.vmem %s0, %s125
        $region20: #{tpu_custom_call.1} parent=15 // pred_fallthru
          _
        // Predicated region
        $region21: #{tpu_custom_call.1} parent=15 // pred_check
          %p127 = pneg %p69
        $region22: #{tpu_custom_call.1} parent=15 // pred_check_branch
          %129 = sbr.rel (%p127) target = $region24
        $region23: #{tpu_custom_call.1} parent=15 // pred_region
          %s130 = smul.u32 64, %s19
          %p131 = scmp.lt.s32.totalorder %s130, 191
          %s132 = scalar_select %p131, %s130, 191
          %s133 = smul.addr %s132, 8
          %s134 = scalar_lea.vmem %s1, %s133
          %s135 = smul.u32 64, %s19
        $region24: #{tpu_custom_call.1} parent=15 // pred_fallthru
          _
      $region16: #{tpu_custom_call.1} parent=5 // pred_fallthru
        _
      %p136 = scmp.le.s32.totalorder 1, %s11
      %p137 = scmp.lt.s32.totalorder %s11, 7
      %p138 = pnand %p136, %p137
      %p139 = pneg %p138
      // Predicated region
      $region25: #{tpu_custom_call.1} parent=5 // pred_check
        _
      $region26: #{tpu_custom_call.1} parent=5 // pred_check_branch
        %141 = sbr.rel (%p138) target = $region28
      $region27: #{tpu_custom_call.1} parent=5 // pred_region
        %s142 = ssub.s32 %s11, 1
        %p143 = scmp.lt.s32.totalorder %s20, 1
        %s144 = scalar_select %p143, %s20, 1
        %s145 = smul.addr %s144, 2
        %s146 = scalar_lea.vmem %s0, %s145
        %p147 = pneg %p49
        %p148 = pneg %p46
        %s149 = smul.u32 64, %s21
        %p150 = scmp.lt.s32.totalorder %s149, 191
        %s151 = scalar_select %p150, %s149, 191
        %s152 = smul.addr %s151, 8
        %s153 = scalar_lea.vmem %s1, %s152
        %p154 = pneg %p75
        %p155 = pneg %p72
        %p156 = pneg %p101
        %p157 = pneg %p98
        %s158 = sand.u32 %s88, 1
        %s159 = scalar_lea.sflag [#allocation4], %s158
        %s160 = sand.u32 %s88, 1
        %s161 = smul.addr %s160, 2
        %s162 = scalar_lea.vmem [#allocation3], %s161
        %p163 = scmp.lt.s32.totalorder %s20, 1
        %s164 = scalar_select %p163, %s20, 1
        %s165 = smul.addr %s164, 2
        %s166 = scalar_lea.vmem %s0, %s165
        %s167 = smul.u32 64, %s21
        %p168 = scmp.lt.s32.totalorder %s167, 191
        %s169 = scalar_select %p168, %s167, 191
        %s170 = smul.addr %s169, 8
        %s171 = scalar_lea.vmem %s1, %s170
        %s172 = smul.u32 64, %s21
        %p173 = scmp.eq.s32.totalorder %s21, 0
        // Predicated region
        $region29: #{tpu_custom_call.1} parent=27 // pred_check
          %p174 = pneg %p173
        $region30: #{tpu_custom_call.1} parent=27 // pred_check_branch
          %176 = sbr.rel (%p174) target = $region32
        $region31: #{tpu_custom_call.1} parent=27 // pred_region
          %177 = vst [vmem:[#allocation2] sm:$0xff] 2147483647
          %178 = vst [vmem:[#allocation2 + $0x8] sm:$0xff] 2147483647
          %179 = vst [vmem:[#allocation2 + $0x10] sm:$0xff] 2147483647
          %180 = vst [vmem:[#allocation2 + $0x18] sm:$0xff] 2147483647
          %181 = vst [vmem:[#allocation2 + $0x20] sm:$0xff] 2147483647
          %182 = vst [vmem:[#allocation2 + $0x28] sm:$0xff] 2147483647
          %183 = vst [vmem:[#allocation2 + $0x30] sm:$0xff] 2147483647
          %184 = vst [vmem:[#allocation2 + $0x38] sm:$0xff] 2147483647
          %185 = vst [vmem:[#allocation2 + $0x40] sm:$0xff] 2147483647
          %186 = vst [vmem:[#allocation2 + $0x48] sm:$0xff] 2147483647
          %187 = vst [vmem:[#allocation2 + $0x50] sm:$0xff] 2147483647
          %188 = vst [vmem:[#allocation2 + $0x58] sm:$0xff] 2147483647
          %189 = vst [vmem:[#allocation2 + $0x60] sm:$0xff] 2147483647
          %190 = vst [vmem:[#allocation2 + $0x68] sm:$0xff] 2147483647
          %191 = vst [vmem:[#allocation2 + $0x70] sm:$0xff] 2147483647
          %192 = vst [vmem:[#allocation2 + $0x78] sm:$0xff] 2147483647
          %193 = vst [vmem:[#allocation2 + $0x80] sm:$0xff] 2147483647
          %194 = vst [vmem:[#allocation2 + $0x88] sm:$0xff] 2147483647
          %195 = vst [vmem:[#allocation2 + $0x90] sm:$0xff] 2147483647
          %196 = vst [vmem:[#allocation2 + $0x98] sm:$0xff] 2147483647
          %197 = vst [vmem:[#allocation2 + $0xa0] sm:$0xff] 2147483647
          %198 = vst [vmem:[#allocation2 + $0xa8] sm:$0xff] 2147483647
          %199 = vst [vmem:[#allocation2 + $0xb0] sm:$0xff] 2147483647
          %200 = vst [vmem:[#allocation2 + $0xb8] sm:$0xff] 2147483647
          %201 = vst [vmem:[#allocation2 + $0xc0] sm:$0xff] 2147483647
          %202 = vst [vmem:[#allocation2 + $0xc8] sm:$0xff] 2147483647
          %203 = vst [vmem:[#allocation2 + $0xd0] sm:$0xff] 2147483647
          %204 = vst [vmem:[#allocation2 + $0xd8] sm:$0xff] 2147483647
          %205 = vst [vmem:[#allocation2 + $0xe0] sm:$0xff] 2147483647
          %206 = vst [vmem:[#allocation2 + $0xe8] sm:$0xff] 2147483647
          %207 = vst [vmem:[#allocation2 + $0xf0] sm:$0xff] 2147483647
          %208 = vst [vmem:[#allocation2 + $0xf8] sm:$0xff] 2147483647
          %209 = vst [vmem:[#allocation2 + $0x100] sm:$0xff] 2147483647
          %210 = vst [vmem:[#allocation2 + $0x108] sm:$0xff] 2147483647
          %211 = vst [vmem:[#allocation2 + $0x110] sm:$0xff] 2147483647
          %212 = vst [vmem:[#allocation2 + $0x118] sm:$0xff] 2147483647
          %213 = vst [vmem:[#allocation2 + $0x120] sm:$0xff] 2147483647
          %214 = vst [vmem:[#allocation2 + $0x128] sm:$0xff] 2147483647
          %215 = vst [vmem:[#allocation2 + $0x130] sm:$0xff] 2147483647
          %216 = vst [vmem:[#allocation2 + $0x138] sm:$0xff] 2147483647
          %217 = vst [vmem:[#allocation2 + $0x140] sm:$0xff] 2147483647
          %218 = vst [vmem:[#allocation2 + $0x148] sm:$0xff] 2147483647
          %219 = vst [vmem:[#allocation2 + $0x150] sm:$0xff] 2147483647
          %220 = vst [vmem:[#allocation2 + $0x158] sm:$0xff] 2147483647
          %221 = vst [vmem:[#allocation2 + $0x160] sm:$0xff] 2147483647
          %222 = vst [vmem:[#allocation2 + $0x168] sm:$0xff] 2147483647
          %223 = vst [vmem:[#allocation2 + $0x170] sm:$0xff] 2147483647
          %224 = vst [vmem:[#allocation2 + $0x178] sm:$0xff] 2147483647
          %225 = vst [vmem:[#allocation2 + $0x180] sm:$0xff] 2147483647
          %226 = vst [vmem:[#allocation2 + $0x188] sm:$0xff] 2147483647
          %227 = vst [vmem:[#allocation2 + $0x190] sm:$0xff] 2147483647
          %228 = vst [vmem:[#allocation2 + $0x198] sm:$0xff] 2147483647
          %229 = vst [vmem:[#allocation2 + $0x1a0] sm:$0xff] 2147483647
          %230 = vst [vmem:[#allocation2 + $0x1a8] sm:$0xff] 2147483647
          %231 = vst [vmem:[#allocation2 + $0x1b0] sm:$0xff] 2147483647
          %232 = vst [vmem:[#allocation2 + $0x1b8] sm:$0xff] 2147483647
          %233 = vst [vmem:[#allocation2 + $0x1c0] sm:$0xff] 2147483647
          %234 = vst [vmem:[#allocation2 + $0x1c8] sm:$0xff] 2147483647
          %235 = vst [vmem:[#allocation2 + $0x1d0] sm:$0xff] 2147483647
          %236 = vst [vmem:[#allocation2 + $0x1d8] sm:$0xff] 2147483647
          %237 = vst [vmem:[#allocation2 + $0x1e0] sm:$0xff] 2147483647
          %238 = vst [vmem:[#allocation2 + $0x1e8] sm:$0xff] 2147483647
          %239 = vst [vmem:[#allocation2 + $0x1f0] sm:$0xff] 2147483647
          %240 = vst [vmem:[#allocation2 + $0x1f8] sm:$0xff] 2147483647
          %241 = vst [vmem:[#allocation2 + $0x200] sm:$0xff] 2147483647
          %242 = vst [vmem:[#allocation2 + $0x208] sm:$0xff] 2147483647
          %243 = vst [vmem:[#allocation2 + $0x210] sm:$0xff] 2147483647
          %244 = vst [vmem:[#allocation2 + $0x218] sm:$0xff] 2147483647
          %245 = vst [vmem:[#allocation2 + $0x220] sm:$0xff] 2147483647
          %246 = vst [vmem:[#allocation2 + $0x228] sm:$0xff] 2147483647
          %247 = vst [vmem:[#allocation2 + $0x230] sm:$0xff] 2147483647
          %248 = vst [vmem:[#allocation2 + $0x238] sm:$0xff] 2147483647
          %249 = vst [vmem:[#allocation2 + $0x240] sm:$0xff] 2147483647
          %250 = vst [vmem:[#allocation2 + $0x248] sm:$0xff] 2147483647
          %251 = vst [vmem:[#allocation2 + $0x250] sm:$0xff] 2147483647
          %252 = vst [vmem:[#allocation2 + $0x258] sm:$0xff] 2147483647
          %253 = vst [vmem:[#allocation2 + $0x260] sm:$0xff] 2147483647
          %254 = vst [vmem:[#allocation2 + $0x268] sm:$0xff] 2147483647
          %255 = vst [vmem:[#allocation2 + $0x270] sm:$0xff] 2147483647
          %256 = vst [vmem:[#allocation2 + $0x278] sm:$0xff] 2147483647
          %257 = vst [vmem:[#allocation2 + $0x280] sm:$0xff] 2147483647
          %258 = vst [vmem:[#allocation2 + $0x288] sm:$0xff] 2147483647
          %259 = vst [vmem:[#allocation2 + $0x290] sm:$0xff] 2147483647
          %260 = vst [vmem:[#allocation2 + $0x298] sm:$0xff] 2147483647
          %261 = vst [vmem:[#allocation2 + $0x2a0] sm:$0xff] 2147483647
          %262 = vst [vmem:[#allocation2 + $0x2a8] sm:$0xff] 2147483647
          %263 = vst [vmem:[#allocation2 + $0x2b0] sm:$0xff] 2147483647
          %264 = vst [vmem:[#allocation2 + $0x2b8] sm:$0xff] 2147483647
          %265 = vst [vmem:[#allocation2 + $0x2c0] sm:$0xff] 2147483647
          %266 = vst [vmem:[#allocation2 + $0x2c8] sm:$0xff] 2147483647
          %267 = vst [vmem:[#allocation2 + $0x2d0] sm:$0xff] 2147483647
          %268 = vst [vmem:[#allocation2 + $0x2d8] sm:$0xff] 2147483647
          %269 = vst [vmem:[#allocation2 + $0x2e0] sm:$0xff] 2147483647
          %270 = vst [vmem:[#allocation2 + $0x2e8] sm:$0xff] 2147483647
          %271 = vst [vmem:[#allocation2 + $0x2f0] sm:$0xff] 2147483647
          %272 = vst [vmem:[#allocation2 + $0x2f8] sm:$0xff] 2147483647
          %273 = vst [vmem:[#allocation2 + $0x300] sm:$0xff] 2147483647
          %274 = vst [vmem:[#allocation2 + $0x308] sm:$0xff] 2147483647
          %275 = vst [vmem:[#allocation2 + $0x310] sm:$0xff] 2147483647
          %276 = vst [vmem:[#allocation2 + $0x318] sm:$0xff] 2147483647
          %277 = vst [vmem:[#allocation2 + $0x320] sm:$0xff] 2147483647
          %278 = vst [vmem:[#allocation2 + $0x328] sm:$0xff] 2147483647
          %279 = vst [vmem:[#allocation2 + $0x330] sm:$0xff] 2147483647
          %280 = vst [vmem:[#allocation2 + $0x338] sm:$0xff] 2147483647
          %281 = vst [vmem:[#allocation2 + $0x340] sm:$0xff] 2147483647
          %282 = vst [vmem:[#allocation2 + $0x348] sm:$0xff] 2147483647
          %283 = vst [vmem:[#allocation2 + $0x350] sm:$0xff] 2147483647
          %284 = vst [vmem:[#allocation2 + $0x358] sm:$0xff] 2147483647
          %285 = vst [vmem:[#allocation2 + $0x360] sm:$0xff] 2147483647
          %286 = vst [vmem:[#allocation2 + $0x368] sm:$0xff] 2147483647
          %287 = vst [vmem:[#allocation2 + $0x370] sm:$0xff] 2147483647
          %288 = vst [vmem:[#allocation2 + $0x378] sm:$0xff] 2147483647
          %289 = vst [vmem:[#allocation2 + $0x380] sm:$0xff] 2147483647
          %290 = vst [vmem:[#allocation2 + $0x388] sm:$0xff] 2147483647
          %291 = vst [vmem:[#allocation2 + $0x390] sm:$0xff] 2147483647
          %292 = vst [vmem:[#allocation2 + $0x398] sm:$0xff] 2147483647
          %293 = vst [vmem:[#allocation2 + $0x3a0] sm:$0xff] 2147483647
          %294 = vst [vmem:[#allocation2 + $0x3a8] sm:$0xff] 2147483647
          %295 = vst [vmem:[#allocation2 + $0x3b0] sm:$0xff] 2147483647
          %296 = vst [vmem:[#allocation2 + $0x3b8] sm:$0xff] 2147483647
          %297 = vst [vmem:[#allocation2 + $0x3c0] sm:$0xff] 2147483647
          %298 = vst [vmem:[#allocation2 + $0x3c8] sm:$0xff] 2147483647
          %299 = vst [vmem:[#allocation2 + $0x3d0] sm:$0xff] 2147483647
          %300 = vst [vmem:[#allocation2 + $0x3d8] sm:$0xff] 2147483647
          %301 = vst [vmem:[#allocation2 + $0x3e0] sm:$0xff] 2147483647
          %302 = vst [vmem:[#allocation2 + $0x3e8] sm:$0xff] 2147483647
          %303 = vst [vmem:[#allocation2 + $0x3f0] sm:$0xff] 2147483647
          %304 = vst [vmem:[#allocation2 + $0x3f8] sm:$0xff] 2147483647
        $region32: #{tpu_custom_call.1} parent=27 // pred_fallthru
          _
        %v305 = vld [vmem:[%s166] sm:$0x3]
        %v306 = vld [vmem:[%s171] sm:$0xff]
        %v307 = vld [vmem:[%s171 + $0x8] sm:$0xff]
        %v308 = vld [vmem:[%s171 + $0x10] sm:$0xff]
        %v309 = vld [vmem:[%s171 + $0x18] sm:$0xff]
        %v310 = vld [vmem:[%s171 + $0x20] sm:$0xff]
        %v311 = vld [vmem:[%s171 + $0x28] sm:$0xff]
        %v312 = vld [vmem:[%s171 + $0x30] sm:$0xff]
        %v313 = vld [vmem:[%s171 + $0x38] sm:$0xff]
        %v314 = vld [vmem:[%s171 + $0x40] sm:$0xff]
        %v315 = vld [vmem:[%s171 + $0x48] sm:$0xff]
        %v316 = vld [vmem:[%s171 + $0x50] sm:$0xff]
        %v317 = vld [vmem:[%s171 + $0x58] sm:$0xff]
        %v318 = vld [vmem:[%s171 + $0x60] sm:$0xff]
        %v319 = vld [vmem:[%s171 + $0x68] sm:$0xff]
        %v320 = vld [vmem:[%s171 + $0x70] sm:$0xff]
        %v321 = vld [vmem:[%s171 + $0x78] sm:$0xff]
        %v322 = vld [vmem:[%s171 + $0x80] sm:$0xff]
        %v323 = vld [vmem:[%s171 + $0x88] sm:$0xff]
        %v324 = vld [vmem:[%s171 + $0x90] sm:$0xff]
        %v325 = vld [vmem:[%s171 + $0x98] sm:$0xff]
        %v326 = vld [vmem:[%s171 + $0xa0] sm:$0xff]
        %v327 = vld [vmem:[%s171 + $0xa8] sm:$0xff]
        %v328 = vld [vmem:[%s171 + $0xb0] sm:$0xff]
        %v329 = vld [vmem:[%s171 + $0xb8] sm:$0xff]
        %v330 = vld [vmem:[%s171 + $0xc0] sm:$0xff]
        %v331 = vld [vmem:[%s171 + $0xc8] sm:$0xff]
        %v332 = vld [vmem:[%s171 + $0xd0] sm:$0xff]
        %v333 = vld [vmem:[%s171 + $0xd8] sm:$0xff]
        %v334 = vld [vmem:[%s171 + $0xe0] sm:$0xff]
        %v335 = vld [vmem:[%s171 + $0xe8] sm:$0xff]
        %v336 = vld [vmem:[%s171 + $0xf0] sm:$0xff]
        %v337 = vld [vmem:[%s171 + $0xf8] sm:$0xff]
        %v338 = vld [vmem:[%s171 + $0x100] sm:$0xff]
        %v339 = vld [vmem:[%s171 + $0x108] sm:$0xff]
        %v340 = vld [vmem:[%s171 + $0x110] sm:$0xff]
        %v341 = vld [vmem:[%s171 + $0x118] sm:$0xff]
        %v342 = vld [vmem:[%s171 + $0x120] sm:$0xff]
        %v343 = vld [vmem:[%s171 + $0x128] sm:$0xff]
        %v344 = vld [vmem:[%s171 + $0x130] sm:$0xff]
        %v345 = vld [vmem:[%s171 + $0x138] sm:$0xff]
        %v346 = vld [vmem:[%s171 + $0x140] sm:$0xff]
        %v347 = vld [vmem:[%s171 + $0x148] sm:$0xff]
        %v348 = vld [vmem:[%s171 + $0x150] sm:$0xff]
        %v349 = vld [vmem:[%s171 + $0x158] sm:$0xff]
        %v350 = vld [vmem:[%s171 + $0x160] sm:$0xff]
        %v351 = vld [vmem:[%s171 + $0x168] sm:$0xff]
        %v352 = vld [vmem:[%s171 + $0x170] sm:$0xff]
        %v353 = vld [vmem:[%s171 + $0x178] sm:$0xff]
        %v354 = vld [vmem:[%s171 + $0x180] sm:$0xff]
        %v355 = vld [vmem:[%s171 + $0x188] sm:$0xff]
        %v356 = vld [vmem:[%s171 + $0x190] sm:$0xff]
        %v357 = vld [vmem:[%s171 + $0x198] sm:$0xff]
        %v358 = vld [vmem:[%s171 + $0x1a0] sm:$0xff]
        %v359 = vld [vmem:[%s171 + $0x1a8] sm:$0xff]
        %v360 = vld [vmem:[%s171 + $0x1b0] sm:$0xff]
        %v361 = vld [vmem:[%s171 + $0x1b8] sm:$0xff]
        %v362 = vld [vmem:[%s171 + $0x1c0] sm:$0xff]
        %v363 = vld [vmem:[%s171 + $0x1c8] sm:$0xff]
        %v364 = vld [vmem:[%s171 + $0x1d0] sm:$0xff]
        %v365 = vld [vmem:[%s171 + $0x1d8] sm:$0xff]
        %v366 = vld [vmem:[%s171 + $0x1e0] sm:$0xff]
        %v367 = vld [vmem:[%s171 + $0x1e8] sm:$0xff]
        %v368 = vld [vmem:[%s171 + $0x1f0] sm:$0xff]
        %v369 = vld [vmem:[%s171 + $0x1f8] sm:$0xff]
        %370 = vset.pattern.permute.xlu0 0
        %371 = vperm.xlu0 %370, %v306
        %v372 = vpop.permute.xlu0 %371
        %373 = vset.pattern.permute.xlu0 0
        %374 = vperm.xlu0 %373, %v307
        %v375 = vpop.permute.xlu0 %374
        %376 = vset.pattern.permute.xlu0 0
        %377 = vperm.xlu0 %376, %v308
        %v378 = vpop.permute.xlu0 %377
        %379 = vset.pattern.permute.xlu0 0
        %380 = vperm.xlu0 %379, %v309
        %v381 = vpop.permute.xlu0 %380
        %382 = vset.pattern.permute.xlu0 0
        %383 = vperm.xlu0 %382, %v310
        %v384 = vpop.permute.xlu0 %383
        %385 = vset.pattern.permute.xlu0 0
        %386 = vperm.xlu0 %385, %v311
        %v387 = vpop.permute.xlu0 %386
        %388 = vset.pattern.permute.xlu0 0
        %389 = vperm.xlu0 %388, %v312
        %v390 = vpop.permute.xlu0 %389
        %391 = vset.pattern.permute.xlu0 0
        %392 = vperm.xlu0 %391, %v313
        %v393 = vpop.permute.xlu0 %392
        %394 = vset.pattern.permute.xlu0 0
        %395 = vperm.xlu0 %394, %v314
        %v396 = vpop.permute.xlu0 %395
        %397 = vset.pattern.permute.xlu0 0
        %398 = vperm.xlu0 %397, %v315
        %v399 = vpop.permute.xlu0 %398
        %400 = vset.pattern.permute.xlu0 0
        %401 = vperm.xlu0 %400, %v316
        %v402 = vpop.permute.xlu0 %401
        %403 = vset.pattern.permute.xlu0 0
        %404 = vperm.xlu0 %403, %v317
        %v405 = vpop.permute.xlu0 %404
        %406 = vset.pattern.permute.xlu0 0
        %407 = vperm.xlu0 %406, %v318
        %v408 = vpop.permute.xlu0 %407
        %409 = vset.pattern.permute.xlu0 0
        %410 = vperm.xlu0 %409, %v319
        %v411 = vpop.permute.xlu0 %410
        %412 = vset.pattern.permute.xlu0 0
        %413 = vperm.xlu0 %412, %v320
        %v414 = vpop.permute.xlu0 %413
        %415 = vset.pattern.permute.xlu0 0
        %416 = vperm.xlu0 %415, %v321
        %v417 = vpop.permute.xlu0 %416
        %418 = vset.pattern.permute.xlu0 0
        %419 = vperm.xlu0 %418, %v322
        %v420 = vpop.permute.xlu0 %419
        %421 = vset.pattern.permute.xlu0 0
        %422 = vperm.xlu0 %421, %v323
        %v423 = vpop.permute.xlu0 %422
        %424 = vset.pattern.permute.xlu0 0
        %425 = vperm.xlu0 %424, %v324
        %v426 = vpop.permute.xlu0 %425
        %427 = vset.pattern.permute.xlu0 0
        %428 = vperm.xlu0 %427, %v325
        %v429 = vpop.permute.xlu0 %428
        %430 = vset.pattern.permute.xlu0 0
        %431 = vperm.xlu0 %430, %v326
        %v432 = vpop.permute.xlu0 %431
        %433 = vset.pattern.permute.xlu0 0
        %434 = vperm.xlu0 %433, %v327
        %v435 = vpop.permute.xlu0 %434
        %436 = vset.pattern.permute.xlu0 0
        %437 = vperm.xlu0 %436, %v328
        %v438 = vpop.permute.xlu0 %437
        %439 = vset.pattern.permute.xlu0 0
        %440 = vperm.xlu0 %439, %v329
        %v441 = vpop.permute.xlu0 %440
        %442 = vset.pattern.permute.xlu0 0
        %443 = vperm.xlu0 %442, %v330
        %v444 = vpop.permute.xlu0 %443
        %445 = vset.pattern.permute.xlu0 0
        %446 = vperm.xlu0 %445, %v331
        %v447 = vpop.permute.xlu0 %446
        %448 = vset.pattern.permute.xlu0 0
        %449 = vperm.xlu0 %448, %v332
        %v450 = vpop.permute.xlu0 %449
        %451 = vset.pattern.permute.xlu0 0
        %452 = vperm.xlu0 %451, %v333
        %v453 = vpop.permute.xlu0 %452
        %454 = vset.pattern.permute.xlu0 0
        %455 = vperm.xlu0 %454, %v334
        %v456 = vpop.permute.xlu0 %455
        %457 = vset.pattern.permute.xlu0 0
        %458 = vperm.xlu0 %457, %v335
        %v459 = vpop.permute.xlu0 %458
        %460 = vset.pattern.permute.xlu0 0
        %461 = vperm.xlu0 %460, %v336
        %v462 = vpop.permute.xlu0 %461
        %463 = vset.pattern.permute.xlu0 0
        %464 = vperm.xlu0 %463, %v337
        %v465 = vpop.permute.xlu0 %464
        %466 = vset.pattern.permute.xlu0 0
        %467 = vperm.xlu0 %466, %v338
        %v468 = vpop.permute.xlu0 %467
        %469 = vset.pattern.permute.xlu0 0
        %470 = vperm.xlu0 %469, %v339
        %v471 = vpop.permute.xlu0 %470
        %472 = vset.pattern.permute.xlu0 0
        %473 = vperm.xlu0 %472, %v340
        %v474 = vpop.permute.xlu0 %473
        %475 = vset.pattern.permute.xlu0 0
        %476 = vperm.xlu0 %475, %v341
        %v477 = vpop.permute.xlu0 %476
        %478 = vset.pattern.permute.xlu0 0
        %479 = vperm.xlu0 %478, %v342
        %v480 = vpop.permute.xlu0 %479
        %481 = vset.pattern.permute.xlu0 0
        %482 = vperm.xlu0 %481, %v343
        %v483 = vpop.permute.xlu0 %482
        %484 = vset.pattern.permute.xlu0 0
        %485 = vperm.xlu0 %484, %v344
        %v486 = vpop.permute.xlu0 %485
        %487 = vset.pattern.permute.xlu0 0
        %488 = vperm.xlu0 %487, %v345
        %v489 = vpop.permute.xlu0 %488
        %490 = vset.pattern.permute.xlu0 0
        %491 = vperm.xlu0 %490, %v346
        %v492 = vpop.permute.xlu0 %491
        %493 = vset.pattern.permute.xlu0 0
        %494 = vperm.xlu0 %493, %v347
        %v495 = vpop.permute.xlu0 %494
        %496 = vset.pattern.permute.xlu0 0
        %497 = vperm.xlu0 %496, %v348
        %v498 = vpop.permute.xlu0 %497
        %499 = vset.pattern.permute.xlu0 0
        %500 = vperm.xlu0 %499, %v349
        %v501 = vpop.permute.xlu0 %500
        %502 = vset.pattern.permute.xlu0 0
        %503 = vperm.xlu0 %502, %v350
        %v504 = vpop.permute.xlu0 %503
        %505 = vset.pattern.permute.xlu0 0
        %506 = vperm.xlu0 %505, %v351
        %v507 = vpop.permute.xlu0 %506
        %508 = vset.pattern.permute.xlu0 0
        %509 = vperm.xlu0 %508, %v352
        %v510 = vpop.permute.xlu0 %509
        %511 = vset.pattern.permute.xlu0 0
        %512 = vperm.xlu0 %511, %v353
        %v513 = vpop.permute.xlu0 %512
        %514 = vset.pattern.permute.xlu0 0
        %515 = vperm.xlu0 %514, %v354
        %v516 = vpop.permute.xlu0 %515
        %517 = vset.pattern.permute.xlu0 0
        %518 = vperm.xlu0 %517, %v355
        %v519 = vpop.permute.xlu0 %518
        %520 = vset.pattern.permute.xlu0 0
        %521 = vperm.xlu0 %520, %v356
        %v522 = vpop.permute.xlu0 %521
        %523 = vset.pattern.permute.xlu0 0
        %524 = vperm.xlu0 %523, %v357
        %v525 = vpop.permute.xlu0 %524
        %526 = vset.pattern.permute.xlu0 0
        %527 = vperm.xlu0 %526, %v358
        %v528 = vpop.permute.xlu0 %527
        %529 = vset.pattern.permute.xlu0 0
        %530 = vperm.xlu0 %529, %v359
        %v531 = vpop.permute.xlu0 %530
        %532 = vset.pattern.permute.xlu0 0
        %533 = vperm.xlu0 %532, %v360
        %v534 = vpop.permute.xlu0 %533
        %535 = vset.pattern.permute.xlu0 0
        %536 = vperm.xlu0 %535, %v361
        %v537 = vpop.permute.xlu0 %536
        %538 = vset.pattern.permute.xlu0 0
        %539 = vperm.xlu0 %538, %v362
        %v540 = vpop.permute.xlu0 %539
        %541 = vset.pattern.permute.xlu0 0
        %542 = vperm.xlu0 %541, %v363
        %v543 = vpop.permute.xlu0 %542
        %544 = vset.pattern.permute.xlu0 0
        %545 = vperm.xlu0 %544, %v364
        %v546 = vpop.permute.xlu0 %545
        %547 = vset.pattern.permute.xlu0 0
        %548 = vperm.xlu0 %547, %v365
        %v549 = vpop.permute.xlu0 %548
        %550 = vset.pattern.permute.xlu0 0
        %551 = vperm.xlu0 %550, %v366
        %v552 = vpop.permute.xlu0 %551
        %553 = vset.pattern.permute.xlu0 0
        %554 = vperm.xlu0 %553, %v367
        %v555 = vpop.permute.xlu0 %554
        %556 = vset.pattern.permute.xlu0 0
        %557 = vperm.xlu0 %556, %v368
        %v558 = vpop.permute.xlu0 %557
        %559 = vset.pattern.permute.xlu0 0
        %560 = vperm.xlu0 %559, %v369
        %v561 = vpop.permute.xlu0 %560
        %v562 = vlaneseq
        %v563 = vshrl.u32 %v562, 7
        %v564 = vsub.s32 0, %v563
        %v565 = vrot.slane %v305, %v564
        %v566 = vlaneseq
        %v567 = vshrl.u32 %v566, 7
        %v568 = vsub.s32 1, %v567
        %v569 = vrot.slane %v305, %v568
        %vm570 = vcmp.eq.s32.totalorder %v372, %v565
        %vm571 = vcmp.eq.s32.totalorder %v372, %v569
        %vm572 = vcmp.eq.s32.totalorder %v375, %v565
        %vm573 = vcmp.eq.s32.totalorder %v375, %v569
        %vm574 = vcmp.eq.s32.totalorder %v378, %v565
        %vm575 = vcmp.eq.s32.totalorder %v378, %v569
        %vm576 = vcmp.eq.s32.totalorder %v381, %v565
        %vm577 = vcmp.eq.s32.totalorder %v381, %v569
        %vm578 = vcmp.eq.s32.totalorder %v384, %v565
        %vm579 = vcmp.eq.s32.totalorder %v384, %v569
        %vm580 = vcmp.eq.s32.totalorder %v387, %v565
        %vm581 = vcmp.eq.s32.totalorder %v387, %v569
        %vm582 = vcmp.eq.s32.totalorder %v390, %v565
        %vm583 = vcmp.eq.s32.totalorder %v390, %v569
        %vm584 = vcmp.eq.s32.totalorder %v393, %v565
        %vm585 = vcmp.eq.s32.totalorder %v393, %v569
        %vm586 = vcmp.eq.s32.totalorder %v396, %v565
        %vm587 = vcmp.eq.s32.totalorder %v396, %v569
        %vm588 = vcmp.eq.s32.totalorder %v399, %v565
        %vm589 = vcmp.eq.s32.totalorder %v399, %v569
        %vm590 = vcmp.eq.s32.totalorder %v402, %v565
        %vm591 = vcmp.eq.s32.totalorder %v402, %v569
        %vm592 = vcmp.eq.s32.totalorder %v405, %v565
        %vm593 = vcmp.eq.s32.totalorder %v405, %v569
        %vm594 = vcmp.eq.s32.totalorder %v408, %v565
        %vm595 = vcmp.eq.s32.totalorder %v408, %v569
        %vm596 = vcmp.eq.s32.totalorder %v411, %v565
        %vm597 = vcmp.eq.s32.totalorder %v411, %v569
        %vm598 = vcmp.eq.s32.totalorder %v414, %v565
        %vm599 = vcmp.eq.s32.totalorder %v414, %v569
        %vm600 = vcmp.eq.s32.totalorder %v417, %v565
        %vm601 = vcmp.eq.s32.totalorder %v417, %v569
        %vm602 = vcmp.eq.s32.totalorder %v420, %v565
        %vm603 = vcmp.eq.s32.totalorder %v420, %v569
        %vm604 = vcmp.eq.s32.totalorder %v423, %v565
        %vm605 = vcmp.eq.s32.totalorder %v423, %v569
        %vm606 = vcmp.eq.s32.totalorder %v426, %v565
        %vm607 = vcmp.eq.s32.totalorder %v426, %v569
        %vm608 = vcmp.eq.s32.totalorder %v429, %v565
        %vm609 = vcmp.eq.s32.totalorder %v429, %v569
        %vm610 = vcmp.eq.s32.totalorder %v432, %v565
        %vm611 = vcmp.eq.s32.totalorder %v432, %v569
        %vm612 = vcmp.eq.s32.totalorder %v435, %v565
        %vm613 = vcmp.eq.s32.totalorder %v435, %v569
        %vm614 = vcmp.eq.s32.totalorder %v438, %v565
        %vm615 = vcmp.eq.s32.totalorder %v438, %v569
        %vm616 = vcmp.eq.s32.totalorder %v441, %v565
        %vm617 = vcmp.eq.s32.totalorder %v441, %v569
        %vm618 = vcmp.eq.s32.totalorder %v444, %v565
        %vm619 = vcmp.eq.s32.totalorder %v444, %v569
        %vm620 = vcmp.eq.s32.totalorder %v447, %v565
        %vm621 = vcmp.eq.s32.totalorder %v447, %v569
        %vm622 = vcmp.eq.s32.totalorder %v450, %v565
        %vm623 = vcmp.eq.s32.totalorder %v450, %v569
        %vm624 = vcmp.eq.s32.totalorder %v453, %v565
        %vm625 = vcmp.eq.s32.totalorder %v453, %v569
        %vm626 = vcmp.eq.s32.totalorder %v456, %v565
        %vm627 = vcmp.eq.s32.totalorder %v456, %v569
        %vm628 = vcmp.eq.s32.totalorder %v459, %v565
        %vm629 = vcmp.eq.s32.totalorder %v459, %v569
        %vm630 = vcmp.eq.s32.totalorder %v462, %v565
        %vm631 = vcmp.eq.s32.totalorder %v462, %v569
        %vm632 = vcmp.eq.s32.totalorder %v465, %v565
        %vm633 = vcmp.eq.s32.totalorder %v465, %v569
        %vm634 = vcmp.eq.s32.totalorder %v468, %v565
        %vm635 = vcmp.eq.s32.totalorder %v468, %v569
        %vm636 = vcmp.eq.s32.totalorder %v471, %v565
        %vm637 = vcmp.eq.s32.totalorder %v471, %v569
        %vm638 = vcmp.eq.s32.totalorder %v474, %v565
        %vm639 = vcmp.eq.s32.totalorder %v474, %v569
        %vm640 = vcmp.eq.s32.totalorder %v477, %v565
        %vm641 = vcmp.eq.s32.totalorder %v477, %v569
        %vm642 = vcmp.eq.s32.totalorder %v480, %v565
        %vm643 = vcmp.eq.s32.totalorder %v480, %v569
        %vm644 = vcmp.eq.s32.totalorder %v483, %v565
        %vm645 = vcmp.eq.s32.totalorder %v483, %v569
        %vm646 = vcmp.eq.s32.totalorder %v486, %v565
        %vm647 = vcmp.eq.s32.totalorder %v486, %v569
        %vm648 = vcmp.eq.s32.totalorder %v489, %v565
        %vm649 = vcmp.eq.s32.totalorder %v489, %v569
        %vm650 = vcmp.eq.s32.totalorder %v492, %v565
        %vm651 = vcmp.eq.s32.totalorder %v492, %v569
        %vm652 = vcmp.eq.s32.totalorder %v495, %v565
        %vm653 = vcmp.eq.s32.totalorder %v495, %v569
        %vm654 = vcmp.eq.s32.totalorder %v498, %v565
        %vm655 = vcmp.eq.s32.totalorder %v498, %v569
        %vm656 = vcmp.eq.s32.totalorder %v501, %v565
        %vm657 = vcmp.eq.s32.totalorder %v501, %v569
        %vm658 = vcmp.eq.s32.totalorder %v504, %v565
        %vm659 = vcmp.eq.s32.totalorder %v504, %v569
        %vm660 = vcmp.eq.s32.totalorder %v507, %v565
        %vm661 = vcmp.eq.s32.totalorder %v507, %v569
        %vm662 = vcmp.eq.s32.totalorder %v510, %v565
        %vm663 = vcmp.eq.s32.totalorder %v510, %v569
        %vm664 = vcmp.eq.s32.totalorder %v513, %v565
        %vm665 = vcmp.eq.s32.totalorder %v513, %v569
        %vm666 = vcmp.eq.s32.totalorder %v516, %v565
        %vm667 = vcmp.eq.s32.totalorder %v516, %v569
        %vm668 = vcmp.eq.s32.totalorder %v519, %v565
        %vm669 = vcmp.eq.s32.totalorder %v519, %v569
        %vm670 = vcmp.eq.s32.totalorder %v522, %v565
        %vm671 = vcmp.eq.s32.totalorder %v522, %v569
        %vm672 = vcmp.eq.s32.totalorder %v525, %v565
        %vm673 = vcmp.eq.s32.totalorder %v525, %v569
        %vm674 = vcmp.eq.s32.totalorder %v528, %v565
        %vm675 = vcmp.eq.s32.totalorder %v528, %v569
        %vm676 = vcmp.eq.s32.totalorder %v531, %v565
        %vm677 = vcmp.eq.s32.totalorder %v531, %v569
        %vm678 = vcmp.eq.s32.totalorder %v534, %v565
        %vm679 = vcmp.eq.s32.totalorder %v534, %v569
        %vm680 = vcmp.eq.s32.totalorder %v537, %v565
        %vm681 = vcmp.eq.s32.totalorder %v537, %v569
        %vm682 = vcmp.eq.s32.totalorder %v540, %v565
        %vm683 = vcmp.eq.s32.totalorder %v540, %v569
        %vm684 = vcmp.eq.s32.totalorder %v543, %v565
        %vm685 = vcmp.eq.s32.totalorder %v543, %v569
        %vm686 = vcmp.eq.s32.totalorder %v546, %v565
        %vm687 = vcmp.eq.s32.totalorder %v546, %v569
        %vm688 = vcmp.eq.s32.totalorder %v549, %v565
        %vm689 = vcmp.eq.s32.totalorder %v549, %v569
        %vm690 = vcmp.eq.s32.totalorder %v552, %v565
        %vm691 = vcmp.eq.s32.totalorder %v552, %v569
        %vm692 = vcmp.eq.s32.totalorder %v555, %v565
        %vm693 = vcmp.eq.s32.totalorder %v555, %v569
        %vm694 = vcmp.eq.s32.totalorder %v558, %v565
        %vm695 = vcmp.eq.s32.totalorder %v558, %v569
        %vm696 = vcmp.eq.s32.totalorder %v561, %v565
        %vm697 = vcmp.eq.s32.totalorder %v561, %v569
        %v698 = vlaneseq
        %v699 = vshrl.u32 %v698, 7
        %v700 = vadd.s32 %v699, 8
        %v701 = vadd.s32 %v699, 16
        %v702 = vadd.s32 %v699, 24
        %v703 = vadd.s32 %v699, 32
        %v704 = vadd.s32 %v699, 40
        %v705 = vadd.s32 %v699, 48
        %v706 = vadd.s32 %v699, 56
        %v707 = vadd.s32 %v699, 64
        %v708 = vadd.s32 %v699, 72
        %v709 = vadd.s32 %v699, 80
        %v710 = vadd.s32 %v699, 88
        %v711 = vadd.s32 %v699, 96
        %v712 = vadd.s32 %v699, 104
        %v713 = vadd.s32 %v699, 112
        %v714 = vadd.s32 %v699, 120
        %v715 = vadd.s32 %v699, 128
        %v716 = vadd.s32 %v699, 136
        %v717 = vadd.s32 %v699, 144
        %v718 = vadd.s32 %v699, 152
        %v719 = vadd.s32 %v699, 160
        %v720 = vadd.s32 %v699, 168
        %v721 = vadd.s32 %v699, 176
        %v722 = vadd.s32 %v699, 184
        %v723 = vadd.s32 %v699, 192
        %v724 = vadd.s32 %v699, 200
        %v725 = vadd.s32 %v699, 208
        %v726 = vadd.s32 %v699, 216
        %v727 = vadd.s32 %v699, 224
        %v728 = vadd.s32 %v699, 232
        %v729 = vadd.s32 %v699, 240
        %v730 = vadd.s32 %v699, 248
        %v731 = vadd.s32 %v699, 256
        %v732 = vadd.s32 %v699, 264
        %v733 = vadd.s32 %v699, 272
        %v734 = vadd.s32 %v699, 280
        %v735 = vadd.s32 %v699, 288
        %v736 = vadd.s32 %v699, 296
        %v737 = vadd.s32 %v699, 304
        %v738 = vadd.s32 %v699, 312
        %v739 = vadd.s32 %v699, 320
        %v740 = vadd.s32 %v699, 328
        %v741 = vadd.s32 %v699, 336
        %v742 = vadd.s32 %v699, 344
        %v743 = vadd.s32 %v699, 352
        %v744 = vadd.s32 %v699, 360
        %v745 = vadd.s32 %v699, 368
        %v746 = vadd.s32 %v699, 376
        %v747 = vadd.s32 %v699, 384
        %v748 = vadd.s32 %v699, 392
        %v749 = vadd.s32 %v699, 400
        %v750 = vadd.s32 %v699, 408
        %v751 = vadd.s32 %v699, 416
        %v752 = vadd.s32 %v699, 424
        %v753 = vadd.s32 %v699, 432
        %v754 = vadd.s32 %v699, 440
        %v755 = vadd.s32 %v699, 448
        %v756 = vadd.s32 %v699, 456
        %v757 = vadd.s32 %v699, 464
        %v758 = vadd.s32 %v699, 472
        %v759 = vadd.s32 %v699, 480
        %v760 = vadd.s32 %v699, 488
        %v761 = vadd.s32 %v699, 496
        %v762 = vadd.s32 %v699, 504
        %s763 = smul.u32 %s21, 512
        %v764 = vstv %s763
        %v765 = vadd.s32 %v699, %v764
        %v766 = vadd.s32 %v700, %v764
        %v767 = vadd.s32 %v701, %v764
        %v768 = vadd.s32 %v702, %v764
        %v769 = vadd.s32 %v703, %v764
        %v770 = vadd.s32 %v704, %v764
        %v771 = vadd.s32 %v705, %v764
        %v772 = vadd.s32 %v706, %v764
        %v773 = vadd.s32 %v707, %v764
        %v774 = vadd.s32 %v708, %v764
        %v775 = vadd.s32 %v709, %v764
        %v776 = vadd.s32 %v710, %v764
        %v777 = vadd.s32 %v711, %v764
        %v778 = vadd.s32 %v712, %v764
        %v779 = vadd.s32 %v713, %v764
        %v780 = vadd.s32 %v714, %v764
        %v781 = vadd.s32 %v715, %v764
        %v782 = vadd.s32 %v716, %v764
        %v783 = vadd.s32 %v717, %v764
        %v784 = vadd.s32 %v718, %v764
        %v785 = vadd.s32 %v719, %v764
        %v786 = vadd.s32 %v720, %v764
        %v787 = vadd.s32 %v721, %v764
        %v788 = vadd.s32 %v722, %v764
        %v789 = vadd.s32 %v723, %v764
        %v790 = vadd.s32 %v724, %v764
        %v791 = vadd.s32 %v725, %v764
        %v792 = vadd.s32 %v726, %v764
        %v793 = vadd.s32 %v727, %v764
        %v794 = vadd.s32 %v728, %v764
        %v795 = vadd.s32 %v729, %v764
        %v796 = vadd.s32 %v730, %v764
        %v797 = vadd.s32 %v731, %v764
        %v798 = vadd.s32 %v732, %v764
        %v799 = vadd.s32 %v733, %v764
        %v800 = vadd.s32 %v734, %v764
        %v801 = vadd.s32 %v735, %v764
        %v802 = vadd.s32 %v736, %v764
        %v803 = vadd.s32 %v737, %v764
        %v804 = vadd.s32 %v738, %v764
        %v805 = vadd.s32 %v739, %v764
        %v806 = vadd.s32 %v740, %v764
        %v807 = vadd.s32 %v741, %v764
        %v808 = vadd.s32 %v742, %v764
        %v809 = vadd.s32 %v743, %v764
        %v810 = vadd.s32 %v744, %v764
        %v811 = vadd.s32 %v745, %v764
        %v812 = vadd.s32 %v746, %v764
        %v813 = vadd.s32 %v747, %v764
        %v814 = vadd.s32 %v748, %v764
        %v815 = vadd.s32 %v749, %v764
        %v816 = vadd.s32 %v750, %v764
        %v817 = vadd.s32 %v751, %v764
        %v818 = vadd.s32 %v752, %v764
        %v819 = vadd.s32 %v753, %v764
        %v820 = vadd.s32 %v754, %v764
        %v821 = vadd.s32 %v755, %v764
        %v822 = vadd.s32 %v756, %v764
        %v823 = vadd.s32 %v757, %v764
        %v824 = vadd.s32 %v758, %v764
        %v825 = vadd.s32 %v759, %v764
        %v826 = vadd.s32 %v760, %v764
        %v827 = vadd.s32 %v761, %v764
        %v828 = vadd.s32 %v762, %v764
        %v829 = vsel %vm570, %v765, 2147483647
        %v830 = vsel %vm571, %v765, 2147483647
        %v831 = vsel %vm572, %v766, 2147483647
        %v832 = vsel %vm573, %v766, 2147483647
        %v833 = vsel %vm574, %v767, 2147483647
        %v834 = vsel %vm575, %v767, 2147483647
        %v835 = vsel %vm576, %v768, 2147483647
        %v836 = vsel %vm577, %v768, 2147483647
        %v837 = vsel %vm578, %v769, 2147483647
        %v838 = vsel %vm579, %v769, 2147483647
        %v839 = vsel %vm580, %v770, 2147483647
        %v840 = vsel %vm581, %v770, 2147483647
        %v841 = vsel %vm582, %v771, 2147483647
        %v842 = vsel %vm583, %v771, 2147483647
        %v843 = vsel %vm584, %v772, 2147483647
        %v844 = vsel %vm585, %v772, 2147483647
        %v845 = vsel %vm586, %v773, 2147483647
        %v846 = vsel %vm587, %v773, 2147483647
        %v847 = vsel %vm588, %v774, 2147483647
        %v848 = vsel %vm589, %v774, 2147483647
        %v849 = vsel %vm590, %v775, 2147483647
        %v850 = vsel %vm591, %v775, 2147483647
        %v851 = vsel %vm592, %v776, 2147483647
        %v852 = vsel %vm593, %v776, 2147483647
        %v853 = vsel %vm594, %v777, 2147483647
        %v854 = vsel %vm595, %v777, 2147483647
        %v855 = vsel %vm596, %v778, 2147483647
        %v856 = vsel %vm597, %v778, 2147483647
        %v857 = vsel %vm598, %v779, 2147483647
        %v858 = vsel %vm599, %v779, 2147483647
        %v859 = vsel %vm600, %v780, 2147483647
        %v860 = vsel %vm601, %v780, 2147483647
        %v861 = vsel %vm602, %v781, 2147483647
        %v862 = vsel %vm603, %v781, 2147483647
        %v863 = vsel %vm604, %v782, 2147483647
        %v864 = vsel %vm605, %v782, 2147483647
        %v865 = vsel %vm606, %v783, 2147483647
        %v866 = vsel %vm607, %v783, 2147483647
        %v867 = vsel %vm608, %v784, 2147483647
        %v868 = vsel %vm609, %v784, 2147483647
        %v869 = vsel %vm610, %v785, 2147483647
        %v870 = vsel %vm611, %v785, 2147483647
        %v871 = vsel %vm612, %v786, 2147483647
        %v872 = vsel %vm613, %v786, 2147483647
        %v873 = vsel %vm614, %v787, 2147483647
        %v874 = vsel %vm615, %v787, 2147483647
        %v875 = vsel %vm616, %v788, 2147483647
        %v876 = vsel %vm617, %v788, 2147483647
        %v877 = vsel %vm618, %v789, 2147483647
        %v878 = vsel %vm619, %v789, 2147483647
        %v879 = vsel %vm620, %v790, 2147483647
        %v880 = vsel %vm621, %v790, 2147483647
        %v881 = vsel %vm622, %v791, 2147483647
        %v882 = vsel %vm623, %v791, 2147483647
        %v883 = vsel %vm624, %v792, 2147483647
        %v884 = vsel %vm625, %v792, 2147483647
        %v885 = vsel %vm626, %v793, 2147483647
        %v886 = vsel %vm627, %v793, 2147483647
        %v887 = vsel %vm628, %v794, 2147483647
        %v888 = vsel %vm629, %v794, 2147483647
        %v889 = vsel %vm630, %v795, 2147483647
        %v890 = vsel %vm631, %v795, 2147483647
        %v891 = vsel %vm632, %v796, 2147483647
        %v892 = vsel %vm633, %v796, 2147483647
        %v893 = vsel %vm634, %v797, 2147483647
        %v894 = vsel %vm635, %v797, 2147483647
        %v895 = vsel %vm636, %v798, 2147483647
        %v896 = vsel %vm637, %v798, 2147483647
        %v897 = vsel %vm638, %v799, 2147483647
        %v898 = vsel %vm639, %v799, 2147483647
        %v899 = vsel %vm640, %v800, 2147483647
        %v900 = vsel %vm641, %v800, 2147483647
        %v901 = vsel %vm642, %v801, 2147483647
        %v902 = vsel %vm643, %v801, 2147483647
        %v903 = vsel %vm644, %v802, 2147483647
        %v904 = vsel %vm645, %v802, 2147483647
        %v905 = vsel %vm646, %v803, 2147483647
        %v906 = vsel %vm647, %v803, 2147483647
        %v907 = vsel %vm648, %v804, 2147483647
        %v908 = vsel %vm649, %v804, 2147483647
        %v909 = vsel %vm650, %v805, 2147483647
        %v910 = vsel %vm651, %v805, 2147483647
        %v911 = vsel %vm652, %v806, 2147483647
        %v912 = vsel %vm653, %v806, 2147483647
        %v913 = vsel %vm654, %v807, 2147483647
        %v914 = vsel %vm655, %v807, 2147483647
        %v915 = vsel %vm656, %v808, 2147483647
        %v916 = vsel %vm657, %v808, 2147483647
        %v917 = vsel %vm658, %v809, 2147483647
        %v918 = vsel %vm659, %v809, 2147483647
        %v919 = vsel %vm660, %v810, 2147483647
        %v920 = vsel %vm661, %v810, 2147483647
        %v921 = vsel %vm662, %v811, 2147483647
        %v922 = vsel %vm663, %v811, 2147483647
        %v923 = vsel %vm664, %v812, 2147483647
        %v924 = vsel %vm665, %v812, 2147483647
        %v925 = vsel %vm666, %v813, 2147483647
        %v926 = vsel %vm667, %v813, 2147483647
        %v927 = vsel %vm668, %v814, 2147483647
        %v928 = vsel %vm669, %v814, 2147483647
        %v929 = vsel %vm670, %v815, 2147483647
        %v930 = vsel %vm671, %v815, 2147483647
        %v931 = vsel %vm672, %v816, 2147483647
        %v932 = vsel %vm673, %v816, 2147483647
        %v933 = vsel %vm674, %v817, 2147483647
        %v934 = vsel %vm675, %v817, 2147483647
        %v935 = vsel %vm676, %v818, 2147483647
        %v936 = vsel %vm677, %v818, 2147483647
        %v937 = vsel %vm678, %v819, 2147483647
        %v938 = vsel %vm679, %v819, 2147483647
        %v939 = vsel %vm680, %v820, 2147483647
        %v940 = vsel %vm681, %v820, 2147483647
        %v941 = vsel %vm682, %v821, 2147483647
        %v942 = vsel %vm683, %v821, 2147483647
        %v943 = vsel %vm684, %v822, 2147483647
        %v944 = vsel %vm685, %v822, 2147483647
        %v945 = vsel %vm686, %v823, 2147483647
        %v946 = vsel %vm687, %v823, 2147483647
        %v947 = vsel %vm688, %v824, 2147483647
        %v948 = vsel %vm689, %v824, 2147483647
        %v949 = vsel %vm690, %v825, 2147483647
        %v950 = vsel %vm691, %v825, 2147483647
        %v951 = vsel %vm692, %v826, 2147483647
        %v952 = vsel %vm693, %v826, 2147483647
        %v953 = vsel %vm694, %v827, 2147483647
        %v954 = vsel %vm695, %v827, 2147483647
        %v955 = vsel %vm696, %v828, 2147483647
        %v956 = vsel %vm697, %v828, 2147483647
        %v957 = vld [vmem:[#allocation2] sm:$0xff]
        %v958 = vld [vmem:[#allocation2 + $0x8] sm:$0xff]
        %v959 = vld [vmem:[#allocation2 + $0x10] sm:$0xff]
        %v960 = vld [vmem:[#allocation2 + $0x18] sm:$0xff]
        %v961 = vld [vmem:[#allocation2 + $0x20] sm:$0xff]
        %v962 = vld [vmem:[#allocation2 + $0x28] sm:$0xff]
        %v963 = vld [vmem:[#allocation2 + $0x30] sm:$0xff]
        %v964 = vld [vmem:[#allocation2 + $0x38] sm:$0xff]
        %v965 = vld [vmem:[#allocation2 + $0x40] sm:$0xff]
        %v966 = vld [vmem:[#allocation2 + $0x48] sm:$0xff]
        %v967 = vld [vmem:[#allocation2 + $0x50] sm:$0xff]
        %v968 = vld [vmem:[#allocation2 + $0x58] sm:$0xff]
        %v969 = vld [vmem:[#allocation2 + $0x60] sm:$0xff]
        %v970 = vld [vmem:[#allocation2 + $0x68] sm:$0xff]
        %v971 = vld [vmem:[#allocation2 + $0x70] sm:$0xff]
        %v972 = vld [vmem:[#allocation2 + $0x78] sm:$0xff]
        %v973 = vld [vmem:[#allocation2 + $0x80] sm:$0xff]
        %v974 = vld [vmem:[#allocation2 + $0x88] sm:$0xff]
        %v975 = vld [vmem:[#allocation2 + $0x90] sm:$0xff]
        %v976 = vld [vmem:[#allocation2 + $0x98] sm:$0xff]
        %v977 = vld [vmem:[#allocation2 + $0xa0] sm:$0xff]
        %v978 = vld [vmem:[#allocation2 + $0xa8] sm:$0xff]
        %v979 = vld [vmem:[#allocation2 + $0xb0] sm:$0xff]
        %v980 = vld [vmem:[#allocation2 + $0xb8] sm:$0xff]
        %v981 = vld [vmem:[#allocation2 + $0xc0] sm:$0xff]
        %v982 = vld [vmem:[#allocation2 + $0xc8] sm:$0xff]
        %v983 = vld [vmem:[#allocation2 + $0xd0] sm:$0xff]
        %v984 = vld [vmem:[#allocation2 + $0xd8] sm:$0xff]
        %v985 = vld [vmem:[#allocation2 + $0xe0] sm:$0xff]
        %v986 = vld [vmem:[#allocation2 + $0xe8] sm:$0xff]
        %v987 = vld [vmem:[#allocation2 + $0xf0] sm:$0xff]
        %v988 = vld [vmem:[#allocation2 + $0xf8] sm:$0xff]
        %v989 = vld [vmem:[#allocation2 + $0x100] sm:$0xff]
        %v990 = vld [vmem:[#allocation2 + $0x108] sm:$0xff]
        %v991 = vld [vmem:[#allocation2 + $0x110] sm:$0xff]
        %v992 = vld [vmem:[#allocation2 + $0x118] sm:$0xff]
        %v993 = vld [vmem:[#allocation2 + $0x120] sm:$0xff]
        %v994 = vld [vmem:[#allocation2 + $0x128] sm:$0xff]
        %v995 = vld [vmem:[#allocation2 + $0x130] sm:$0xff]
        %v996 = vld [vmem:[#allocation2 + $0x138] sm:$0xff]
        %v997 = vld [vmem:[#allocation2 + $0x140] sm:$0xff]
        %v998 = vld [vmem:[#allocation2 + $0x148] sm:$0xff]
        %v999 = vld [vmem:[#allocation2 + $0x150] sm:$0xff]
        %v1000 = vld [vmem:[#allocation2 + $0x158] sm:$0xff]
        %v1001 = vld [vmem:[#allocation2 + $0x160] sm:$0xff]
        %v1002 = vld [vmem:[#allocation2 + $0x168] sm:$0xff]
        %v1003 = vld [vmem:[#allocation2 + $0x170] sm:$0xff]
        %v1004 = vld [vmem:[#allocation2 + $0x178] sm:$0xff]
        %v1005 = vld [vmem:[#allocation2 + $0x180] sm:$0xff]
        %v1006 = vld [vmem:[#allocation2 + $0x188] sm:$0xff]
        %v1007 = vld [vmem:[#allocation2 + $0x190] sm:$0xff]
        %v1008 = vld [vmem:[#allocation2 + $0x198] sm:$0xff]
        %v1009 = vld [vmem:[#allocation2 + $0x1a0] sm:$0xff]
        %v1010 = vld [vmem:[#allocation2 + $0x1a8] sm:$0xff]
        %v1011 = vld [vmem:[#allocation2 + $0x1b0] sm:$0xff]
        %v1012 = vld [vmem:[#allocation2 + $0x1b8] sm:$0xff]
        %v1013 = vld [vmem:[#allocation2 + $0x1c0] sm:$0xff]
        %v1014 = vld [vmem:[#allocation2 + $0x1c8] sm:$0xff]
        %v1015 = vld [vmem:[#allocation2 + $0x1d0] sm:$0xff]
        %v1016 = vld [vmem:[#allocation2 + $0x1d8] sm:$0xff]
        %v1017 = vld [vmem:[#allocation2 + $0x1e0] sm:$0xff]
        %v1018 = vld [vmem:[#allocation2 + $0x1e8] sm:$0xff]
        %v1019 = vld [vmem:[#allocation2 + $0x1f0] sm:$0xff]
        %v1020 = vld [vmem:[#allocation2 + $0x1f8] sm:$0xff]
        %v1021 = vld [vmem:[#allocation2 + $0x200] sm:$0xff]
        %v1022 = vld [vmem:[#allocation2 + $0x208] sm:$0xff]
        %v1023 = vld [vmem:[#allocation2 + $0x210] sm:$0xff]
        %v1024 = vld [vmem:[#allocation2 + $0x218] sm:$0xff]
        %v1025 = vld [vmem:[#allocation2 + $0x220] sm:$0xff]
        %v1026 = vld [vmem:[#allocation2 + $0x228] sm:$0xff]
        %v1027 = vld [vmem:[#allocation2 + $0x230] sm:$0xff]
        %v1028 = vld [vmem:[#allocation2 + $0x238] sm:$0xff]
        %v1029 = vld [vmem:[#allocation2 + $0x240] sm:$0xff]
        %v1030 = vld [vmem:[#allocation2 + $0x248] sm:$0xff]
        %v1031 = vld [vmem:[#allocation2 + $0x250] sm:$0xff]
        %v1032 = vld [vmem:[#allocation2 + $0x258] sm:$0xff]
        %v1033 = vld [vmem:[#allocation2 + $0x260] sm:$0xff]
        %v1034 = vld [vmem:[#allocation2 + $0x268] sm:$0xff]
        %v1035 = vld [vmem:[#allocation2 + $0x270] sm:$0xff]
        %v1036 = vld [vmem:[#allocation2 + $0x278] sm:$0xff]
        %v1037 = vld [vmem:[#allocation2 + $0x280] sm:$0xff]
        %v1038 = vld [vmem:[#allocation2 + $0x288] sm:$0xff]
        %v1039 = vld [vmem:[#allocation2 + $0x290] sm:$0xff]
        %v1040 = vld [vmem:[#allocation2 + $0x298] sm:$0xff]
        %v1041 = vld [vmem:[#allocation2 + $0x2a0] sm:$0xff]
        %v1042 = vld [vmem:[#allocation2 + $0x2a8] sm:$0xff]
        %v1043 = vld [vmem:[#allocation2 + $0x2b0] sm:$0xff]
        %v1044 = vld [vmem:[#allocation2 + $0x2b8] sm:$0xff]
        %v1045 = vld [vmem:[#allocation2 + $0x2c0] sm:$0xff]
        %v1046 = vld [vmem:[#allocation2 + $0x2c8] sm:$0xff]
        %v1047 = vld [vmem:[#allocation2 + $0x2d0] sm:$0xff]
        %v1048 = vld [vmem:[#allocation2 + $0x2d8] sm:$0xff]
        %v1049 = vld [vmem:[#allocation2 + $0x2e0] sm:$0xff]
        %v1050 = vld [vmem:[#allocation2 + $0x2e8] sm:$0xff]
        %v1051 = vld [vmem:[#allocation2 + $0x2f0] sm:$0xff]
        %v1052 = vld [vmem:[#allocation2 + $0x2f8] sm:$0xff]
        %v1053 = vld [vmem:[#allocation2 + $0x300] sm:$0xff]
        %v1054 = vld [vmem:[#allocation2 + $0x308] sm:$0xff]
        %v1055 = vld [vmem:[#allocation2 + $0x310] sm:$0xff]
        %v1056 = vld [vmem:[#allocation2 + $0x318] sm:$0xff]
        %v1057 = vld [vmem:[#allocation2 + $0x320] sm:$0xff]
        %v1058 = vld [vmem:[#allocation2 + $0x328] sm:$0xff]
        %v1059 = vld [vmem:[#allocation2 + $0x330] sm:$0xff]
        %v1060 = vld [vmem:[#allocation2 + $0x338] sm:$0xff]
        %v1061 = vld [vmem:[#allocation2 + $0x340] sm:$0xff]
        %v1062 = vld [vmem:[#allocation2 + $0x348] sm:$0xff]
        %v1063 = vld [vmem:[#allocation2 + $0x350] sm:$0xff]
        %v1064 = vld [vmem:[#allocation2 + $0x358] sm:$0xff]
        %v1065 = vld [vmem:[#allocation2 + $0x360] sm:$0xff]
        %v1066 = vld [vmem:[#allocation2 + $0x368] sm:$0xff]
        %v1067 = vld [vmem:[#allocation2 + $0x370] sm:$0xff]
        %v1068 = vld [vmem:[#allocation2 + $0x378] sm:$0xff]
        %v1069 = vld [vmem:[#allocation2 + $0x380] sm:$0xff]
        %v1070 = vld [vmem:[#allocation2 + $0x388] sm:$0xff]
        %v1071 = vld [vmem:[#allocation2 + $0x390] sm:$0xff]
        %v1072 = vld [vmem:[#allocation2 + $0x398] sm:$0xff]
        %v1073 = vld [vmem:[#allocation2 + $0x3a0] sm:$0xff]
        %v1074 = vld [vmem:[#allocation2 + $0x3a8] sm:$0xff]
        %v1075 = vld [vmem:[#allocation2 + $0x3b0] sm:$0xff]
        %v1076 = vld [vmem:[#allocation2 + $0x3b8] sm:$0xff]
        %v1077 = vld [vmem:[#allocation2 + $0x3c0] sm:$0xff]
        %v1078 = vld [vmem:[#allocation2 + $0x3c8] sm:$0xff]
        %v1079 = vld [vmem:[#allocation2 + $0x3d0] sm:$0xff]
        %v1080 = vld [vmem:[#allocation2 + $0x3d8] sm:$0xff]
        %v1081 = vld [vmem:[#allocation2 + $0x3e0] sm:$0xff]
        %v1082 = vld [vmem:[#allocation2 + $0x3e8] sm:$0xff]
        %v1083 = vld [vmem:[#allocation2 + $0x3f0] sm:$0xff]
        %v1084 = vld [vmem:[#allocation2 + $0x3f8] sm:$0xff]
        %vm1085 = vcmp.lt.s32.totalorder %v957, %v829
        %v1086 = vsel %vm1085, %v957, %v829
        %vm1087 = vcmp.lt.s32.totalorder %v958, %v830
        %v1088 = vsel %vm1087, %v958, %v830
        %vm1089 = vcmp.lt.s32.totalorder %v959, %v831
        %v1090 = vsel %vm1089, %v959, %v831
        %vm1091 = vcmp.lt.s32.totalorder %v960, %v832
        %v1092 = vsel %vm1091, %v960, %v832
        %vm1093 = vcmp.lt.s32.totalorder %v961, %v833
        %v1094 = vsel %vm1093, %v961, %v833
        %vm1095 = vcmp.lt.s32.totalorder %v962, %v834
        %v1096 = vsel %vm1095, %v962, %v834
        %vm1097 = vcmp.lt.s32.totalorder %v963, %v835
        %v1098 = vsel %vm1097, %v963, %v835
        %vm1099 = vcmp.lt.s32.totalorder %v964, %v836
        %v1100 = vsel %vm1099, %v964, %v836
        %vm1101 = vcmp.lt.s32.totalorder %v965, %v837
        %v1102 = vsel %vm1101, %v965, %v837
        %vm1103 = vcmp.lt.s32.totalorder %v966, %v838
        %v1104 = vsel %vm1103, %v966, %v838
        %vm1105 = vcmp.lt.s32.totalorder %v967, %v839
        %v1106 = vsel %vm1105, %v967, %v839
        %vm1107 = vcmp.lt.s32.totalorder %v968, %v840
        %v1108 = vsel %vm1107, %v968, %v840
        %vm1109 = vcmp.lt.s32.totalorder %v969, %v841
        %v1110 = vsel %vm1109, %v969, %v841
        %vm1111 = vcmp.lt.s32.totalorder %v970, %v842
        %v1112 = vsel %vm1111, %v970, %v842
        %vm1113 = vcmp.lt.s32.totalorder %v971, %v843
        %v1114 = vsel %vm1113, %v971, %v843
        %vm1115 = vcmp.lt.s32.totalorder %v972, %v844
        %v1116 = vsel %vm1115, %v972, %v844
        %vm1117 = vcmp.lt.s32.totalorder %v973, %v845
        %v1118 = vsel %vm1117, %v973, %v845
        %vm1119 = vcmp.lt.s32.totalorder %v974, %v846
        %v1120 = vsel %vm1119, %v974, %v846
        %vm1121 = vcmp.lt.s32.totalorder %v975, %v847
        %v1122 = vsel %vm1121, %v975, %v847
        %vm1123 = vcmp.lt.s32.totalorder %v976, %v848
        %v1124 = vsel %vm1123, %v976, %v848
        %vm1125 = vcmp.lt.s32.totalorder %v977, %v849
        %v1126 = vsel %vm1125, %v977, %v849
        %vm1127 = vcmp.lt.s32.totalorder %v978, %v850
        %v1128 = vsel %vm1127, %v978, %v850
        %vm1129 = vcmp.lt.s32.totalorder %v979, %v851
        %v1130 = vsel %vm1129, %v979, %v851
        %vm1131 = vcmp.lt.s32.totalorder %v980, %v852
        %v1132 = vsel %vm1131, %v980, %v852
        %vm1133 = vcmp.lt.s32.totalorder %v981, %v853
        %v1134 = vsel %vm1133, %v981, %v853
        %vm1135 = vcmp.lt.s32.totalorder %v982, %v854
        %v1136 = vsel %vm1135, %v982, %v854
        %vm1137 = vcmp.lt.s32.totalorder %v983, %v855
        %v1138 = vsel %vm1137, %v983, %v855
        %vm1139 = vcmp.lt.s32.totalorder %v984, %v856
        %v1140 = vsel %vm1139, %v984, %v856
        %vm1141 = vcmp.lt.s32.totalorder %v985, %v857
        %v1142 = vsel %vm1141, %v985, %v857
        %vm1143 = vcmp.lt.s32.totalorder %v986, %v858
        %v1144 = vsel %vm1143, %v986, %v858
        %vm1145 = vcmp.lt.s32.totalorder %v987, %v859
        %v1146 = vsel %vm1145, %v987, %v859
        %vm1147 = vcmp.lt.s32.totalorder %v988, %v860
        %v1148 = vsel %vm1147, %v988, %v860
        %vm1149 = vcmp.lt.s32.totalorder %v989, %v861
        %v1150 = vsel %vm1149, %v989, %v861
        %vm1151 = vcmp.lt.s32.totalorder %v990, %v862
        %v1152 = vsel %vm1151, %v990, %v862
        %vm1153 = vcmp.lt.s32.totalorder %v991, %v863
        %v1154 = vsel %vm1153, %v991, %v863
        %vm1155 = vcmp.lt.s32.totalorder %v992, %v864
        %v1156 = vsel %vm1155, %v992, %v864
        %vm1157 = vcmp.lt.s32.totalorder %v993, %v865
        %v1158 = vsel %vm1157, %v993, %v865
        %vm1159 = vcmp.lt.s32.totalorder %v994, %v866
        %v1160 = vsel %vm1159, %v994, %v866
        %vm1161 = vcmp.lt.s32.totalorder %v995, %v867
        %v1162 = vsel %vm1161, %v995, %v867
        %vm1163 = vcmp.lt.s32.totalorder %v996, %v868
        %v1164 = vsel %vm1163, %v996, %v868
        %vm1165 = vcmp.lt.s32.totalorder %v997, %v869
        %v1166 = vsel %vm1165, %v997, %v869
        %vm1167 = vcmp.lt.s32.totalorder %v998, %v870
        %v1168 = vsel %vm1167, %v998, %v870
        %vm1169 = vcmp.lt.s32.totalorder %v999, %v871
        %v1170 = vsel %vm1169, %v999, %v871
        %vm1171 = vcmp.lt.s32.totalorder %v1000, %v872
        %v1172 = vsel %vm1171, %v1000, %v872
        %vm1173 = vcmp.lt.s32.totalorder %v1001, %v873
        %v1174 = vsel %vm1173, %v1001, %v873
        %vm1175 = vcmp.lt.s32.totalorder %v1002, %v874
        %v1176 = vsel %vm1175, %v1002, %v874
        %vm1177 = vcmp.lt.s32.totalorder %v1003, %v875
        %v1178 = vsel %vm1177, %v1003, %v875
        %vm1179 = vcmp.lt.s32.totalorder %v1004, %v876
        %v1180 = vsel %vm1179, %v1004, %v876
        %vm1181 = vcmp.lt.s32.totalorder %v1005, %v877
        %v1182 = vsel %vm1181, %v1005, %v877
        %vm1183 = vcmp.lt.s32.totalorder %v1006, %v878
        %v1184 = vsel %vm1183, %v1006, %v878
        %vm1185 = vcmp.lt.s32.totalorder %v1007, %v879
        %v1186 = vsel %vm1185, %v1007, %v879
        %vm1187 = vcmp.lt.s32.totalorder %v1008, %v880
        %v1188 = vsel %vm1187, %v1008, %v880
        %vm1189 = vcmp.lt.s32.totalorder %v1009, %v881
        %v1190 = vsel %vm1189, %v1009, %v881
        %vm1191 = vcmp.lt.s32.totalorder %v1010, %v882
        %v1192 = vsel %vm1191, %v1010, %v882
        %vm1193 = vcmp.lt.s32.totalorder %v1011, %v883
        %v1194 = vsel %vm1193, %v1011, %v883
        %vm1195 = vcmp.lt.s32.totalorder %v1012, %v884
        %v1196 = vsel %vm1195, %v1012, %v884
        %vm1197 = vcmp.lt.s32.totalorder %v1013, %v885
        %v1198 = vsel %vm1197, %v1013, %v885
        %vm1199 = vcmp.lt.s32.totalorder %v1014, %v886
        %v1200 = vsel %vm1199, %v1014, %v886
        %vm1201 = vcmp.lt.s32.totalorder %v1015, %v887
        %v1202 = vsel %vm1201, %v1015, %v887
        %vm1203 = vcmp.lt.s32.totalorder %v1016, %v888
        %v1204 = vsel %vm1203, %v1016, %v888
        %vm1205 = vcmp.lt.s32.totalorder %v1017, %v889
        %v1206 = vsel %vm1205, %v1017, %v889
        %vm1207 = vcmp.lt.s32.totalorder %v1018, %v890
        %v1208 = vsel %vm1207, %v1018, %v890
        %vm1209 = vcmp.lt.s32.totalorder %v1019, %v891
        %v1210 = vsel %vm1209, %v1019, %v891
        %vm1211 = vcmp.lt.s32.totalorder %v1020, %v892
        %v1212 = vsel %vm1211, %v1020, %v892
        %vm1213 = vcmp.lt.s32.totalorder %v1021, %v893
        %v1214 = vsel %vm1213, %v1021, %v893
        %vm1215 = vcmp.lt.s32.totalorder %v1022, %v894
        %v1216 = vsel %vm1215, %v1022, %v894
        %vm1217 = vcmp.lt.s32.totalorder %v1023, %v895
        %v1218 = vsel %vm1217, %v1023, %v895
        %vm1219 = vcmp.lt.s32.totalorder %v1024, %v896
        %v1220 = vsel %vm1219, %v1024, %v896
        %vm1221 = vcmp.lt.s32.totalorder %v1025, %v897
        %v1222 = vsel %vm1221, %v1025, %v897
        %vm1223 = vcmp.lt.s32.totalorder %v1026, %v898
        %v1224 = vsel %vm1223, %v1026, %v898
        %vm1225 = vcmp.lt.s32.totalorder %v1027, %v899
        %v1226 = vsel %vm1225, %v1027, %v899
        %vm1227 = vcmp.lt.s32.totalorder %v1028, %v900
        %v1228 = vsel %vm1227, %v1028, %v900
        %vm1229 = vcmp.lt.s32.totalorder %v1029, %v901
        %v1230 = vsel %vm1229, %v1029, %v901
        %vm1231 = vcmp.lt.s32.totalorder %v1030, %v902
        %v1232 = vsel %vm1231, %v1030, %v902
        %vm1233 = vcmp.lt.s32.totalorder %v1031, %v903
        %v1234 = vsel %vm1233, %v1031, %v903
        %vm1235 = vcmp.lt.s32.totalorder %v1032, %v904
        %v1236 = vsel %vm1235, %v1032, %v904
        %vm1237 = vcmp.lt.s32.totalorder %v1033, %v905
        %v1238 = vsel %vm1237, %v1033, %v905
        %vm1239 = vcmp.lt.s32.totalorder %v1034, %v906
        %v1240 = vsel %vm1239, %v1034, %v906
        %vm1241 = vcmp.lt.s32.totalorder %v1035, %v907
        %v1242 = vsel %vm1241, %v1035, %v907
        %vm1243 = vcmp.lt.s32.totalorder %v1036, %v908
        %v1244 = vsel %vm1243, %v1036, %v908
        %vm1245 = vcmp.lt.s32.totalorder %v1037, %v909
        %v1246 = vsel %vm1245, %v1037, %v909
        %vm1247 = vcmp.lt.s32.totalorder %v1038, %v910
        %v1248 = vsel %vm1247, %v1038, %v910
        %vm1249 = vcmp.lt.s32.totalorder %v1039, %v911
        %v1250 = vsel %vm1249, %v1039, %v911
        %vm1251 = vcmp.lt.s32.totalorder %v1040, %v912
        %v1252 = vsel %vm1251, %v1040, %v912
        %vm1253 = vcmp.lt.s32.totalorder %v1041, %v913
        %v1254 = vsel %vm1253, %v1041, %v913
        %vm1255 = vcmp.lt.s32.totalorder %v1042, %v914
        %v1256 = vsel %vm1255, %v1042, %v914
        %vm1257 = vcmp.lt.s32.totalorder %v1043, %v915
        %v1258 = vsel %vm1257, %v1043, %v915
        %vm1259 = vcmp.lt.s32.totalorder %v1044, %v916
        %v1260 = vsel %vm1259, %v1044, %v916
        %vm1261 = vcmp.lt.s32.totalorder %v1045, %v917
        %v1262 = vsel %vm1261, %v1045, %v917
        %vm1263 = vcmp.lt.s32.totalorder %v1046, %v918
        %v1264 = vsel %vm1263, %v1046, %v918
        %vm1265 = vcmp.lt.s32.totalorder %v1047, %v919
        %v1266 = vsel %vm1265, %v1047, %v919
        %vm1267 = vcmp.lt.s32.totalorder %v1048, %v920
        %v1268 = vsel %vm1267, %v1048, %v920
        %vm1269 = vcmp.lt.s32.totalorder %v1049, %v921
        %v1270 = vsel %vm1269, %v1049, %v921
        %vm1271 = vcmp.lt.s32.totalorder %v1050, %v922
        %v1272 = vsel %vm1271, %v1050, %v922
        %vm1273 = vcmp.lt.s32.totalorder %v1051, %v923
        %v1274 = vsel %vm1273, %v1051, %v923
        %vm1275 = vcmp.lt.s32.totalorder %v1052, %v924
        %v1276 = vsel %vm1275, %v1052, %v924
        %vm1277 = vcmp.lt.s32.totalorder %v1053, %v925
        %v1278 = vsel %vm1277, %v1053, %v925
        %vm1279 = vcmp.lt.s32.totalorder %v1054, %v926
        %v1280 = vsel %vm1279, %v1054, %v926
        %vm1281 = vcmp.lt.s32.totalorder %v1055, %v927
        %v1282 = vsel %vm1281, %v1055, %v927
        %vm1283 = vcmp.lt.s32.totalorder %v1056, %v928
        %v1284 = vsel %vm1283, %v1056, %v928
        %vm1285 = vcmp.lt.s32.totalorder %v1057, %v929
        %v1286 = vsel %vm1285, %v1057, %v929
        %vm1287 = vcmp.lt.s32.totalorder %v1058, %v930
        %v1288 = vsel %vm1287, %v1058, %v930
        %vm1289 = vcmp.lt.s32.totalorder %v1059, %v931
        %v1290 = vsel %vm1289, %v1059, %v931
        %vm1291 = vcmp.lt.s32.totalorder %v1060, %v932
        %v1292 = vsel %vm1291, %v1060, %v932
        %vm1293 = vcmp.lt.s32.totalorder %v1061, %v933
        %v1294 = vsel %vm1293, %v1061, %v933
        %vm1295 = vcmp.lt.s32.totalorder %v1062, %v934
        %v1296 = vsel %vm1295, %v1062, %v934
        %vm1297 = vcmp.lt.s32.totalorder %v1063, %v935
        %v1298 = vsel %vm1297, %v1063, %v935
        %vm1299 = vcmp.lt.s32.totalorder %v1064, %v936
        %v1300 = vsel %vm1299, %v1064, %v936
        %vm1301 = vcmp.lt.s32.totalorder %v1065, %v937
        %v1302 = vsel %vm1301, %v1065, %v937
        %vm1303 = vcmp.lt.s32.totalorder %v1066, %v938
        %v1304 = vsel %vm1303, %v1066, %v938
        %vm1305 = vcmp.lt.s32.totalorder %v1067, %v939
        %v1306 = vsel %vm1305, %v1067, %v939
        %vm1307 = vcmp.lt.s32.totalorder %v1068, %v940
        %v1308 = vsel %vm1307, %v1068, %v940
        %vm1309 = vcmp.lt.s32.totalorder %v1069, %v941
        %v1310 = vsel %vm1309, %v1069, %v941
        %vm1311 = vcmp.lt.s32.totalorder %v1070, %v942
        %v1312 = vsel %vm1311, %v1070, %v942
        %vm1313 = vcmp.lt.s32.totalorder %v1071, %v943
        %v1314 = vsel %vm1313, %v1071, %v943
        %vm1315 = vcmp.lt.s32.totalorder %v1072, %v944
        %v1316 = vsel %vm1315, %v1072, %v944
        %vm1317 = vcmp.lt.s32.totalorder %v1073, %v945
        %v1318 = vsel %vm1317, %v1073, %v945
        %vm1319 = vcmp.lt.s32.totalorder %v1074, %v946
        %v1320 = vsel %vm1319, %v1074, %v946
        %vm1321 = vcmp.lt.s32.totalorder %v1075, %v947
        %v1322 = vsel %vm1321, %v1075, %v947
        %vm1323 = vcmp.lt.s32.totalorder %v1076, %v948
        %v1324 = vsel %vm1323, %v1076, %v948
        %vm1325 = vcmp.lt.s32.totalorder %v1077, %v949
        %v1326 = vsel %vm1325, %v1077, %v949
        %vm1327 = vcmp.lt.s32.totalorder %v1078, %v950
        %v1328 = vsel %vm1327, %v1078, %v950
        %vm1329 = vcmp.lt.s32.totalorder %v1079, %v951
        %v1330 = vsel %vm1329, %v1079, %v951
        %vm1331 = vcmp.lt.s32.totalorder %v1080, %v952
        %v1332 = vsel %vm1331, %v1080, %v952
        %vm1333 = vcmp.lt.s32.totalorder %v1081, %v953
        %v1334 = vsel %vm1333, %v1081, %v953
        %vm1335 = vcmp.lt.s32.totalorder %v1082, %v954
        %v1336 = vsel %vm1335, %v1082, %v954
        %vm1337 = vcmp.lt.s32.totalorder %v1083, %v955
        %v1338 = vsel %vm1337, %v1083, %v955
        %vm1339 = vcmp.lt.s32.totalorder %v1084, %v956
        %v1340 = vsel %vm1339, %v1084, %v956
        %1341 = vst [vmem:[#allocation2] sm:$0xff] %v1086
        %1342 = vst [vmem:[#allocation2 + $0x8] sm:$0xff] %v1088
        %1343 = vst [vmem:[#allocation2 + $0x10] sm:$0xff] %v1090
        %1344 = vst [vmem:[#allocation2 + $0x18] sm:$0xff] %v1092
        %1345 = vst [vmem:[#allocation2 + $0x20] sm:$0xff] %v1094
        %1346 = vst [vmem:[#allocation2 + $0x28] sm:$0xff] %v1096
        %1347 = vst [vmem:[#allocation2 + $0x30] sm:$0xff] %v1098
        %1348 = vst [vmem:[#allocation2 + $0x38] sm:$0xff] %v1100
        %1349 = vst [vmem:[#allocation2 + $0x40] sm:$0xff] %v1102
        %1350 = vst [vmem:[#allocation2 + $0x48] sm:$0xff] %v1104
        %1351 = vst [vmem:[#allocation2 + $0x50] sm:$0xff] %v1106
        %1352 = vst [vmem:[#allocation2 + $0x58] sm:$0xff] %v1108
        %1353 = vst [vmem:[#allocation2 + $0x60] sm:$0xff] %v1110
        %1354 = vst [vmem:[#allocation2 + $0x68] sm:$0xff] %v1112
        %1355 = vst [vmem:[#allocation2 + $0x70] sm:$0xff] %v1114
        %1356 = vst [vmem:[#allocation2 + $0x78] sm:$0xff] %v1116
        %1357 = vst [vmem:[#allocation2 + $0x80] sm:$0xff] %v1118
        %1358 = vst [vmem:[#allocation2 + $0x88] sm:$0xff] %v1120
        %1359 = vst [vmem:[#allocation2 + $0x90] sm:$0xff] %v1122
        %1360 = vst [vmem:[#allocation2 + $0x98] sm:$0xff] %v1124
        %1361 = vst [vmem:[#allocation2 + $0xa0] sm:$0xff] %v1126
        %1362 = vst [vmem:[#allocation2 + $0xa8] sm:$0xff] %v1128
        %1363 = vst [vmem:[#allocation2 + $0xb0] sm:$0xff] %v1130
        %1364 = vst [vmem:[#allocation2 + $0xb8] sm:$0xff] %v1132
        %1365 = vst [vmem:[#allocation2 + $0xc0] sm:$0xff] %v1134
        %1366 = vst [vmem:[#allocation2 + $0xc8] sm:$0xff] %v1136
        %1367 = vst [vmem:[#allocation2 + $0xd0] sm:$0xff] %v1138
        %1368 = vst [vmem:[#allocation2 + $0xd8] sm:$0xff] %v1140
        %1369 = vst [vmem:[#allocation2 + $0xe0] sm:$0xff] %v1142
        %1370 = vst [vmem:[#allocation2 + $0xe8] sm:$0xff] %v1144
        %1371 = vst [vmem:[#allocation2 + $0xf0] sm:$0xff] %v1146
        %1372 = vst [vmem:[#allocation2 + $0xf8] sm:$0xff] %v1148
        %1373 = vst [vmem:[#allocation2 + $0x100] sm:$0xff] %v1150
        %1374 = vst [vmem:[#allocation2 + $0x108] sm:$0xff] %v1152
        %1375 = vst [vmem:[#allocation2 + $0x110] sm:$0xff] %v1154
        %1376 = vst [vmem:[#allocation2 + $0x118] sm:$0xff] %v1156
        %1377 = vst [vmem:[#allocation2 + $0x120] sm:$0xff] %v1158
        %1378 = vst [vmem:[#allocation2 + $0x128] sm:$0xff] %v1160
        %1379 = vst [vmem:[#allocation2 + $0x130] sm:$0xff] %v1162
        %1380 = vst [vmem:[#allocation2 + $0x138] sm:$0xff] %v1164
        %1381 = vst [vmem:[#allocation2 + $0x140] sm:$0xff] %v1166
        %1382 = vst [vmem:[#allocation2 + $0x148] sm:$0xff] %v1168
        %1383 = vst [vmem:[#allocation2 + $0x150] sm:$0xff] %v1170
        %1384 = vst [vmem:[#allocation2 + $0x158] sm:$0xff] %v1172
        %1385 = vst [vmem:[#allocation2 + $0x160] sm:$0xff] %v1174
        %1386 = vst [vmem:[#allocation2 + $0x168] sm:$0xff] %v1176
        %1387 = vst [vmem:[#allocation2 + $0x170] sm:$0xff] %v1178
        %1388 = vst [vmem:[#allocation2 + $0x178] sm:$0xff] %v1180
        %1389 = vst [vmem:[#allocation2 + $0x180] sm:$0xff] %v1182
        %1390 = vst [vmem:[#allocation2 + $0x188] sm:$0xff] %v1184
        %1391 = vst [vmem:[#allocation2 + $0x190] sm:$0xff] %v1186
        %1392 = vst [vmem:[#allocation2 + $0x198] sm:$0xff] %v1188
        %1393 = vst [vmem:[#allocation2 + $0x1a0] sm:$0xff] %v1190
        %1394 = vst [vmem:[#allocation2 + $0x1a8] sm:$0xff] %v1192
        %1395 = vst [vmem:[#allocation2 + $0x1b0] sm:$0xff] %v1194
        %1396 = vst [vmem:[#allocation2 + $0x1b8] sm:$0xff] %v1196
        %1397 = vst [vmem:[#allocation2 + $0x1c0] sm:$0xff] %v1198
        %1398 = vst [vmem:[#allocation2 + $0x1c8] sm:$0xff] %v1200
        %1399 = vst [vmem:[#allocation2 + $0x1d0] sm:$0xff] %v1202
        %1400 = vst [vmem:[#allocation2 + $0x1d8] sm:$0xff] %v1204
        %1401 = vst [vmem:[#allocation2 + $0x1e0] sm:$0xff] %v1206
        %1402 = vst [vmem:[#allocation2 + $0x1e8] sm:$0xff] %v1208
        %1403 = vst [vmem:[#allocation2 + $0x1f0] sm:$0xff] %v1210
        %1404 = vst [vmem:[#allocation2 + $0x1f8] sm:$0xff] %v1212
        %1405 = vst [vmem:[#allocation2 + $0x200] sm:$0xff] %v1214
        %1406 = vst [vmem:[#allocation2 + $0x208] sm:$0xff] %v1216
        %1407 = vst [vmem:[#allocation2 + $0x210] sm:$0xff] %v1218
        %1408 = vst [vmem:[#allocation2 + $0x218] sm:$0xff] %v1220
        %1409 = vst [vmem:[#allocation2 + $0x220] sm:$0xff] %v1222
        %1410 = vst [vmem:[#allocation2 + $0x228] sm:$0xff] %v1224
        %1411 = vst [vmem:[#allocation2 + $0x230] sm:$0xff] %v1226
        %1412 = vst [vmem:[#allocation2 + $0x238] sm:$0xff] %v1228
        %1413 = vst [vmem:[#allocation2 + $0x240] sm:$0xff] %v1230
        %1414 = vst [vmem:[#allocation2 + $0x248] sm:$0xff] %v1232
        %1415 = vst [vmem:[#allocation2 + $0x250] sm:$0xff] %v1234
        %1416 = vst [vmem:[#allocation2 + $0x258] sm:$0xff] %v1236
        %1417 = vst [vmem:[#allocation2 + $0x260] sm:$0xff] %v1238
        %1418 = vst [vmem:[#allocation2 + $0x268] sm:$0xff] %v1240
        %1419 = vst [vmem:[#allocation2 + $0x270] sm:$0xff] %v1242
        %1420 = vst [vmem:[#allocation2 + $0x278] sm:$0xff] %v1244
        %1421 = vst [vmem:[#allocation2 + $0x280] sm:$0xff] %v1246
        %1422 = vst [vmem:[#allocation2 + $0x288] sm:$0xff] %v1248
        %1423 = vst [vmem:[#allocation2 + $0x290] sm:$0xff] %v1250
        %1424 = vst [vmem:[#allocation2 + $0x298] sm:$0xff] %v1252
        %1425 = vst [vmem:[#allocation2 + $0x2a0] sm:$0xff] %v1254
        %1426 = vst [vmem:[#allocation2 + $0x2a8] sm:$0xff] %v1256
        %1427 = vst [vmem:[#allocation2 + $0x2b0] sm:$0xff] %v1258
        %1428 = vst [vmem:[#allocation2 + $0x2b8] sm:$0xff] %v1260
        %1429 = vst [vmem:[#allocation2 + $0x2c0] sm:$0xff] %v1262
        %1430 = vst [vmem:[#allocation2 + $0x2c8] sm:$0xff] %v1264
        %1431 = vst [vmem:[#allocation2 + $0x2d0] sm:$0xff] %v1266
        %1432 = vst [vmem:[#allocation2 + $0x2d8] sm:$0xff] %v1268
        %1433 = vst [vmem:[#allocation2 + $0x2e0] sm:$0xff] %v1270
        %1434 = vst [vmem:[#allocation2 + $0x2e8] sm:$0xff] %v1272
        %1435 = vst [vmem:[#allocation2 + $0x2f0] sm:$0xff] %v1274
        %1436 = vst [vmem:[#allocation2 + $0x2f8] sm:$0xff] %v1276
        %1437 = vst [vmem:[#allocation2 + $0x300] sm:$0xff] %v1278
        %1438 = vst [vmem:[#allocation2 + $0x308] sm:$0xff] %v1280
        %1439 = vst [vmem:[#allocation2 + $0x310] sm:$0xff] %v1282
        %1440 = vst [vmem:[#allocation2 + $0x318] sm:$0xff] %v1284
        %1441 = vst [vmem:[#allocation2 + $0x320] sm:$0xff] %v1286
        %1442 = vst [vmem:[#allocation2 + $0x328] sm:$0xff] %v1288
        %1443 = vst [vmem:[#allocation2 + $0x330] sm:$0xff] %v1290
        %1444 = vst [vmem:[#allocation2 + $0x338] sm:$0xff] %v1292
        %1445 = vst [vmem:[#allocation2 + $0x340] sm:$0xff] %v1294
        %1446 = vst [vmem:[#allocation2 + $0x348] sm:$0xff] %v1296
        %1447 = vst [vmem:[#allocation2 + $0x350] sm:$0xff] %v1298
        %1448 = vst [vmem:[#allocation2 + $0x358] sm:$0xff] %v1300
        %1449 = vst [vmem:[#allocation2 + $0x360] sm:$0xff] %v1302
        %1450 = vst [vmem:[#allocation2 + $0x368] sm:$0xff] %v1304
        %1451 = vst [vmem:[#allocation2 + $0x370] sm:$0xff] %v1306
        %1452 = vst [vmem:[#allocation2 + $0x378] sm:$0xff] %v1308
        %1453 = vst [vmem:[#allocation2 + $0x380] sm:$0xff] %v1310
        %1454 = vst [vmem:[#allocation2 + $0x388] sm:$0xff] %v1312
        %1455 = vst [vmem:[#allocation2 + $0x390] sm:$0xff] %v1314
        %1456 = vst [vmem:[#allocation2 + $0x398] sm:$0xff] %v1316
        %1457 = vst [vmem:[#allocation2 + $0x3a0] sm:$0xff] %v1318
        %1458 = vst [vmem:[#allocation2 + $0x3a8] sm:$0xff] %v1320
        %1459 = vst [vmem:[#allocation2 + $0x3b0] sm:$0xff] %v1322
        %1460 = vst [vmem:[#allocation2 + $0x3b8] sm:$0xff] %v1324
        %1461 = vst [vmem:[#allocation2 + $0x3c0] sm:$0xff] %v1326
        %1462 = vst [vmem:[#allocation2 + $0x3c8] sm:$0xff] %v1328
        %1463 = vst [vmem:[#allocation2 + $0x3d0] sm:$0xff] %v1330
        %1464 = vst [vmem:[#allocation2 + $0x3d8] sm:$0xff] %v1332
        %1465 = vst [vmem:[#allocation2 + $0x3e0] sm:$0xff] %v1334
        %1466 = vst [vmem:[#allocation2 + $0x3e8] sm:$0xff] %v1336
        %1467 = vst [vmem:[#allocation2 + $0x3f0] sm:$0xff] %v1338
        %1468 = vst [vmem:[#allocation2 + $0x3f8] sm:$0xff] %v1340
        %p1469 = scmp.eq.s32.totalorder %s21, 2
        // Predicated region
        $region33: #{tpu_custom_call.1} parent=27 // pred_check
          %p1470 = pneg %p1469
        $region34: #{tpu_custom_call.1} parent=27 // pred_check_branch
          %1472 = sbr.rel (%p1470) target = $region36
        $region35: #{tpu_custom_call.1} parent=27 // pred_region
          %v1473 = vld [vmem:[#allocation2] sm:$0xff]
          %v1474 = vld [vmem:[#allocation2 + $0x8] sm:$0xff]
          %v1475 = vld [vmem:[#allocation2 + $0x10] sm:$0xff]
          %v1476 = vld [vmem:[#allocation2 + $0x18] sm:$0xff]
          %v1477 = vld [vmem:[#allocation2 + $0x20] sm:$0xff]
          %v1478 = vld [vmem:[#allocation2 + $0x28] sm:$0xff]
          %v1479 = vld [vmem:[#allocation2 + $0x30] sm:$0xff]
          %v1480 = vld [vmem:[#allocation2 + $0x38] sm:$0xff]
          %v1481 = vld [vmem:[#allocation2 + $0x40] sm:$0xff]
          %v1482 = vld [vmem:[#allocation2 + $0x48] sm:$0xff]
          %v1483 = vld [vmem:[#allocation2 + $0x50] sm:$0xff]
          %v1484 = vld [vmem:[#allocation2 + $0x58] sm:$0xff]
          %v1485 = vld [vmem:[#allocation2 + $0x60] sm:$0xff]
          %v1486 = vld [vmem:[#allocation2 + $0x68] sm:$0xff]
          %v1487 = vld [vmem:[#allocation2 + $0x70] sm:$0xff]
          %v1488 = vld [vmem:[#allocation2 + $0x78] sm:$0xff]
          %v1489 = vld [vmem:[#allocation2 + $0x80] sm:$0xff]
          %v1490 = vld [vmem:[#allocation2 + $0x88] sm:$0xff]
          %v1491 = vld [vmem:[#allocation2 + $0x90] sm:$0xff]
          %v1492 = vld [vmem:[#allocation2 + $0x98] sm:$0xff]
          %v1493 = vld [vmem:[#allocation2 + $0xa0] sm:$0xff]
          %v1494 = vld [vmem:[#allocation2 + $0xa8] sm:$0xff]
          %v1495 = vld [vmem:[#allocation2 + $0xb0] sm:$0xff]
          %v1496 = vld [vmem:[#allocation2 + $0xb8] sm:$0xff]
          %v1497 = vld [vmem:[#allocation2 + $0xc0] sm:$0xff]
          %v1498 = vld [vmem:[#allocation2 + $0xc8] sm:$0xff]
          %v1499 = vld [vmem:[#allocation2 + $0xd0] sm:$0xff]
          %v1500 = vld [vmem:[#allocation2 + $0xd8] sm:$0xff]
          %v1501 = vld [vmem:[#allocation2 + $0xe0] sm:$0xff]
          %v1502 = vld [vmem:[#allocation2 + $0xe8] sm:$0xff]
          %v1503 = vld [vmem:[#allocation2 + $0xf0] sm:$0xff]
          %v1504 = vld [vmem:[#allocation2 + $0xf8] sm:$0xff]
          %v1505 = vld [vmem:[#allocation2 + $0x100] sm:$0xff]
          %v1506 = vld [vmem:[#allocation2 + $0x108] sm:$0xff]
          %v1507 = vld [vmem:[#allocation2 + $0x110] sm:$0xff]
          %v1508 = vld [vmem:[#allocation2 + $0x118] sm:$0xff]
          %v1509 = vld [vmem:[#allocation2 + $0x120] sm:$0xff]
          %v1510 = vld [vmem:[#allocation2 + $0x128] sm:$0xff]
          %v1511 = vld [vmem:[#allocation2 + $0x130] sm:$0xff]
          %v1512 = vld [vmem:[#allocation2 + $0x138] sm:$0xff]
          %v1513 = vld [vmem:[#allocation2 + $0x140] sm:$0xff]
          %v1514 = vld [vmem:[#allocation2 + $0x148] sm:$0xff]
          %v1515 = vld [vmem:[#allocation2 + $0x150] sm:$0xff]
          %v1516 = vld [vmem:[#allocation2 + $0x158] sm:$0xff]
          %v1517 = vld [vmem:[#allocation2 + $0x160] sm:$0xff]
          %v1518 = vld [vmem:[#allocation2 + $0x168] sm:$0xff]
          %v1519 = vld [vmem:[#allocation2 + $0x170] sm:$0xff]
          %v1520 = vld [vmem:[#allocation2 + $0x178] sm:$0xff]
          %v1521 = vld [vmem:[#allocation2 + $0x180] sm:$0xff]
          %v1522 = vld [vmem:[#allocation2 + $0x188] sm:$0xff]
          %v1523 = vld [vmem:[#allocation2 + $0x190] sm:$0xff]
          %v1524 = vld [vmem:[#allocation2 + $0x198] sm:$0xff]
          %v1525 = vld [vmem:[#allocation2 + $0x1a0] sm:$0xff]
          %v1526 = vld [vmem:[#allocation2 + $0x1a8] sm:$0xff]
          %v1527 = vld [vmem:[#allocation2 + $0x1b0] sm:$0xff]
          %v1528 = vld [vmem:[#allocation2 + $0x1b8] sm:$0xff]
          %v1529 = vld [vmem:[#allocation2 + $0x1c0] sm:$0xff]
          %v1530 = vld [vmem:[#allocation2 + $0x1c8] sm:$0xff]
          %v1531 = vld [vmem:[#allocation2 + $0x1d0] sm:$0xff]
          %v1532 = vld [vmem:[#allocation2 + $0x1d8] sm:$0xff]
          %v1533 = vld [vmem:[#allocation2 + $0x1e0] sm:$0xff]
          %v1534 = vld [vmem:[#allocation2 + $0x1e8] sm:$0xff]
          %v1535 = vld [vmem:[#allocation2 + $0x1f0] sm:$0xff]
          %v1536 = vld [vmem:[#allocation2 + $0x1f8] sm:$0xff]
          %v1537 = vld [vmem:[#allocation2 + $0x200] sm:$0xff]
          %v1538 = vld [vmem:[#allocation2 + $0x208] sm:$0xff]
          %v1539 = vld [vmem:[#allocation2 + $0x210] sm:$0xff]
          %v1540 = vld [vmem:[#allocation2 + $0x218] sm:$0xff]
          %v1541 = vld [vmem:[#allocation2 + $0x220] sm:$0xff]
          %v1542 = vld [vmem:[#allocation2 + $0x228] sm:$0xff]
          %v1543 = vld [vmem:[#allocation2 + $0x230] sm:$0xff]
          %v1544 = vld [vmem:[#allocation2 + $0x238] sm:$0xff]
          %v1545 = vld [vmem:[#allocation2 + $0x240] sm:$0xff]
          %v1546 = vld [vmem:[#allocation2 + $0x248] sm:$0xff]
          %v1547 = vld [vmem:[#allocation2 + $0x250] sm:$0xff]
          %v1548 = vld [vmem:[#allocation2 + $0x258] sm:$0xff]
          %v1549 = vld [vmem:[#allocation2 + $0x260] sm:$0xff]
          %v1550 = vld [vmem:[#allocation2 + $0x268] sm:$0xff]
          %v1551 = vld [vmem:[#allocation2 + $0x270] sm:$0xff]
          %v1552 = vld [vmem:[#allocation2 + $0x278] sm:$0xff]
          %v1553 = vld [vmem:[#allocation2 + $0x280] sm:$0xff]
          %v1554 = vld [vmem:[#allocation2 + $0x288] sm:$0xff]
          %v1555 = vld [vmem:[#allocation2 + $0x290] sm:$0xff]
          %v1556 = vld [vmem:[#allocation2 + $0x298] sm:$0xff]
          %v1557 = vld [vmem:[#allocation2 + $0x2a0] sm:$0xff]
          %v1558 = vld [vmem:[#allocation2 + $0x2a8] sm:$0xff]
          %v1559 = vld [vmem:[#allocation2 + $0x2b0] sm:$0xff]
          %v1560 = vld [vmem:[#allocation2 + $0x2b8] sm:$0xff]
          %v1561 = vld [vmem:[#allocation2 + $0x2c0] sm:$0xff]
          %v1562 = vld [vmem:[#allocation2 + $0x2c8] sm:$0xff]
          %v1563 = vld [vmem:[#allocation2 + $0x2d0] sm:$0xff]
          %v1564 = vld [vmem:[#allocation2 + $0x2d8] sm:$0xff]
          %v1565 = vld [vmem:[#allocation2 + $0x2e0] sm:$0xff]
          %v1566 = vld [vmem:[#allocation2 + $0x2e8] sm:$0xff]
          %v1567 = vld [vmem:[#allocation2 + $0x2f0] sm:$0xff]
          %v1568 = vld [vmem:[#allocation2 + $0x2f8] sm:$0xff]
          %v1569 = vld [vmem:[#allocation2 + $0x300] sm:$0xff]
          %v1570 = vld [vmem:[#allocation2 + $0x308] sm:$0xff]
          %v1571 = vld [vmem:[#allocation2 + $0x310] sm:$0xff]
          %v1572 = vld [vmem:[#allocation2 + $0x318] sm:$0xff]
          %v1573 = vld [vmem:[#allocation2 + $0x320] sm:$0xff]
          %v1574 = vld [vmem:[#allocation2 + $0x328] sm:$0xff]
          %v1575 = vld [vmem:[#allocation2 + $0x330] sm:$0xff]
          %v1576 = vld [vmem:[#allocation2 + $0x338] sm:$0xff]
          %v1577 = vld [vmem:[#allocation2 + $0x340] sm:$0xff]
          %v1578 = vld [vmem:[#allocation2 + $0x348] sm:$0xff]
          %v1579 = vld [vmem:[#allocation2 + $0x350] sm:$0xff]
          %v1580 = vld [vmem:[#allocation2 + $0x358] sm:$0xff]
          %v1581 = vld [vmem:[#allocation2 + $0x360] sm:$0xff]
          %v1582 = vld [vmem:[#allocation2 + $0x368] sm:$0xff]
          %v1583 = vld [vmem:[#allocation2 + $0x370] sm:$0xff]
          %v1584 = vld [vmem:[#allocation2 + $0x378] sm:$0xff]
          %v1585 = vld [vmem:[#allocation2 + $0x380] sm:$0xff]
          %v1586 = vld [vmem:[#allocation2 + $0x388] sm:$0xff]
          %v1587 = vld [vmem:[#allocation2 + $0x390] sm:$0xff]
          %v1588 = vld [vmem:[#allocation2 + $0x398] sm:$0xff]
          %v1589 = vld [vmem:[#allocation2 + $0x3a0] sm:$0xff]
          %v1590 = vld [vmem:[#allocation2 + $0x3a8] sm:$0xff]
          %v1591 = vld [vmem:[#allocation2 + $0x3b0] sm:$0xff]
          %v1592 = vld [vmem:[#allocation2 + $0x3b8] sm:$0xff]
          %v1593 = vld [vmem:[#allocation2 + $0x3c0] sm:$0xff]
          %v1594 = vld [vmem:[#allocation2 + $0x3c8] sm:$0xff]
          %v1595 = vld [vmem:[#allocation2 + $0x3d0] sm:$0xff]
          %v1596 = vld [vmem:[#allocation2 + $0x3d8] sm:$0xff]
          %v1597 = vld [vmem:[#allocation2 + $0x3e0] sm:$0xff]
          %v1598 = vld [vmem:[#allocation2 + $0x3e8] sm:$0xff]
          %v1599 = vld [vmem:[#allocation2 + $0x3f0] sm:$0xff]
          %v1600 = vld [vmem:[#allocation2 + $0x3f8] sm:$0xff]
          %vm1601 = vcmp.lt.s32.totalorder %v1473, %v1477
          %v1602 = vsel %vm1601, %v1473, %v1477
          %vm1603 = vcmp.lt.s32.totalorder %v1475, %v1479
          %v1604 = vsel %vm1603, %v1475, %v1479
          %vm1605 = vcmp.lt.s32.totalorder %v1602, %v1481
          %v1606 = vsel %vm1605, %v1602, %v1481
          %vm1607 = vcmp.lt.s32.totalorder %v1604, %v1483
          %v1608 = vsel %vm1607, %v1604, %v1483
          %vm1609 = vcmp.lt.s32.totalorder %v1606, %v1485
          %v1610 = vsel %vm1609, %v1606, %v1485
          %vm1611 = vcmp.lt.s32.totalorder %v1608, %v1487
          %v1612 = vsel %vm1611, %v1608, %v1487
          %vm1613 = vcmp.lt.s32.totalorder %v1610, %v1489
          %v1614 = vsel %vm1613, %v1610, %v1489
          %vm1615 = vcmp.lt.s32.totalorder %v1612, %v1491
          %v1616 = vsel %vm1615, %v1612, %v1491
          %vm1617 = vcmp.lt.s32.totalorder %v1614, %v1493
          %v1618 = vsel %vm1617, %v1614, %v1493
          %vm1619 = vcmp.lt.s32.totalorder %v1616, %v1495
          %v1620 = vsel %vm1619, %v1616, %v1495
          %vm1621 = vcmp.lt.s32.totalorder %v1618, %v1497
          %v1622 = vsel %vm1621, %v1618, %v1497
          %vm1623 = vcmp.lt.s32.totalorder %v1620, %v1499
          %v1624 = vsel %vm1623, %v1620, %v1499
          %vm1625 = vcmp.lt.s32.totalorder %v1622, %v1501
          %v1626 = vsel %vm1625, %v1622, %v1501
          %vm1627 = vcmp.lt.s32.totalorder %v1624, %v1503
          %v1628 = vsel %vm1627, %v1624, %v1503
          %vm1629 = vcmp.lt.s32.totalorder %v1626, %v1505
          %v1630 = vsel %vm1629, %v1626, %v1505
          %vm1631 = vcmp.lt.s32.totalorder %v1628, %v1507
          %v1632 = vsel %vm1631, %v1628, %v1507
          %vm1633 = vcmp.lt.s32.totalorder %v1630, %v1509
          %v1634 = vsel %vm1633, %v1630, %v1509
          %vm1635 = vcmp.lt.s32.totalorder %v1632, %v1511
          %v1636 = vsel %vm1635, %v1632, %v1511
          %vm1637 = vcmp.lt.s32.totalorder %v1634, %v1513
          %v1638 = vsel %vm1637, %v1634, %v1513
          %vm1639 = vcmp.lt.s32.totalorder %v1636, %v1515
          %v1640 = vsel %vm1639, %v1636, %v1515
          %vm1641 = vcmp.lt.s32.totalorder %v1638, %v1517
          %v1642 = vsel %vm1641, %v1638, %v1517
          %vm1643 = vcmp.lt.s32.totalorder %v1640, %v1519
          %v1644 = vsel %vm1643, %v1640, %v1519
          %vm1645 = vcmp.lt.s32.totalorder %v1642, %v1521
          %v1646 = vsel %vm1645, %v1642, %v1521
          %vm1647 = vcmp.lt.s32.totalorder %v1644, %v1523
          %v1648 = vsel %vm1647, %v1644, %v1523
          %vm1649 = vcmp.lt.s32.totalorder %v1646, %v1525
          %v1650 = vsel %vm1649, %v1646, %v1525
          %vm1651 = vcmp.lt.s32.totalorder %v1648, %v1527
          %v1652 = vsel %vm1651, %v1648, %v1527
          %vm1653 = vcmp.lt.s32.totalorder %v1650, %v1529
          %v1654 = vsel %vm1653, %v1650, %v1529
          %vm1655 = vcmp.lt.s32.totalorder %v1652, %v1531
          %v1656 = vsel %vm1655, %v1652, %v1531
          %vm1657 = vcmp.lt.s32.totalorder %v1654, %v1533
          %v1658 = vsel %vm1657, %v1654, %v1533
          %vm1659 = vcmp.lt.s32.totalorder %v1656, %v1535
          %v1660 = vsel %vm1659, %v1656, %v1535
          %vm1661 = vcmp.lt.s32.totalorder %v1658, %v1537
          %v1662 = vsel %vm1661, %v1658, %v1537
          %vm1663 = vcmp.lt.s32.totalorder %v1660, %v1539
          %v1664 = vsel %vm1663, %v1660, %v1539
          %vm1665 = vcmp.lt.s32.totalorder %v1662, %v1541
          %v1666 = vsel %vm1665, %v1662, %v1541
          %vm1667 = vcmp.lt.s32.totalorder %v1664, %v1543
          %v1668 = vsel %vm1667, %v1664, %v1543
          %vm1669 = vcmp.lt.s32.totalorder %v1666, %v1545
          %v1670 = vsel %vm1669, %v1666, %v1545
          %vm1671 = vcmp.lt.s32.totalorder %v1668, %v1547
          %v1672 = vsel %vm1671, %v1668, %v1547
          %vm1673 = vcmp.lt.s32.totalorder %v1670, %v1549
          %v1674 = vsel %vm1673, %v1670, %v1549
          %vm1675 = vcmp.lt.s32.totalorder %v1672, %v1551
          %v1676 = vsel %vm1675, %v1672, %v1551
          %vm1677 = vcmp.lt.s32.totalorder %v1674, %v1553
          %v1678 = vsel %vm1677, %v1674, %v1553
          %vm1679 = vcmp.lt.s32.totalorder %v1676, %v1555
          %v1680 = vsel %vm1679, %v1676, %v1555
          %vm1681 = vcmp.lt.s32.totalorder %v1678, %v1557
          %v1682 = vsel %vm1681, %v1678, %v1557
          %vm1683 = vcmp.lt.s32.totalorder %v1680, %v1559
          %v1684 = vsel %vm1683, %v1680, %v1559
          %vm1685 = vcmp.lt.s32.totalorder %v1682, %v1561
          %v1686 = vsel %vm1685, %v1682, %v1561
          %vm1687 = vcmp.lt.s32.totalorder %v1684, %v1563
          %v1688 = vsel %vm1687, %v1684, %v1563
          %vm1689 = vcmp.lt.s32.totalorder %v1686, %v1565
          %v1690 = vsel %vm1689, %v1686, %v1565
          %vm1691 = vcmp.lt.s32.totalorder %v1688, %v1567
          %v1692 = vsel %vm1691, %v1688, %v1567
          %vm1693 = vcmp.lt.s32.totalorder %v1690, %v1569
          %v1694 = vsel %vm1693, %v1690, %v1569
          %vm1695 = vcmp.lt.s32.totalorder %v1692, %v1571
          %v1696 = vsel %vm1695, %v1692, %v1571
          %vm1697 = vcmp.lt.s32.totalorder %v1694, %v1573
          %v1698 = vsel %vm1697, %v1694, %v1573
          %vm1699 = vcmp.lt.s32.totalorder %v1696, %v1575
          %v1700 = vsel %vm1699, %v1696, %v1575
          %vm1701 = vcmp.lt.s32.totalorder %v1698, %v1577
          %v1702 = vsel %vm1701, %v1698, %v1577
          %vm1703 = vcmp.lt.s32.totalorder %v1700, %v1579
          %v1704 = vsel %vm1703, %v1700, %v1579
          %vm1705 = vcmp.lt.s32.totalorder %v1702, %v1581
          %v1706 = vsel %vm1705, %v1702, %v1581
          %vm1707 = vcmp.lt.s32.totalorder %v1704, %v1583
          %v1708 = vsel %vm1707, %v1704, %v1583
          %vm1709 = vcmp.lt.s32.totalorder %v1706, %v1585
          %v1710 = vsel %vm1709, %v1706, %v1585
          %vm1711 = vcmp.lt.s32.totalorder %v1708, %v1587
          %v1712 = vsel %vm1711, %v1708, %v1587
          %vm1713 = vcmp.lt.s32.totalorder %v1710, %v1589
          %v1714 = vsel %vm1713, %v1710, %v1589
          %vm1715 = vcmp.lt.s32.totalorder %v1712, %v1591
          %v1716 = vsel %vm1715, %v1712, %v1591
          %vm1717 = vcmp.lt.s32.totalorder %v1714, %v1593
          %v1718 = vsel %vm1717, %v1714, %v1593
          %vm1719 = vcmp.lt.s32.totalorder %v1716, %v1595
          %v1720 = vsel %vm1719, %v1716, %v1595
          %vm1721 = vcmp.lt.s32.totalorder %v1718, %v1597
          %v1722 = vsel %vm1721, %v1718, %v1597
          %vm1723 = vcmp.lt.s32.totalorder %v1720, %v1599
          %v1724 = vsel %vm1723, %v1720, %v1599
          %vm1725 = vcmp.lt.s32.totalorder %v1722, %v1724
          %v1726 = vsel %vm1725, %v1722, %v1724
          %v1727 = vrot.slane %v1726, 4
          %vm1728 = vcmp.lt.s32.totalorder %v1726, %v1727
          %v1729 = vsel %vm1728, %v1726, %v1727
          %v1730 = vrot.slane %v1729, 2
          %vm1731 = vcmp.lt.s32.totalorder %v1729, %v1730
          %v1732 = vsel %vm1731, %v1729, %v1730
          %v1733 = vrot.slane %v1732, 1
          %vm1734 = vcmp.lt.s32.totalorder %v1732, %v1733
          %v1735 = vsel %vm1734, %v1732, %v1733
          %vm1736 = vcmp.lt.s32.totalorder %v1474, %v1478
          %v1737 = vsel %vm1736, %v1474, %v1478
          %vm1738 = vcmp.lt.s32.totalorder %v1476, %v1480
          %v1739 = vsel %vm1738, %v1476, %v1480
          %vm1740 = vcmp.lt.s32.totalorder %v1737, %v1482
          %v1741 = vsel %vm1740, %v1737, %v1482
          %vm1742 = vcmp.lt.s32.totalorder %v1739, %v1484
          %v1743 = vsel %vm1742, %v1739, %v1484
          %vm1744 = vcmp.lt.s32.totalorder %v1741, %v1486
          %v1745 = vsel %vm1744, %v1741, %v1486
          %vm1746 = vcmp.lt.s32.totalorder %v1743, %v1488
          %v1747 = vsel %vm1746, %v1743, %v1488
          %vm1748 = vcmp.lt.s32.totalorder %v1745, %v1490
          %v1749 = vsel %vm1748, %v1745, %v1490
          %vm1750 = vcmp.lt.s32.totalorder %v1747, %v1492
          %v1751 = vsel %vm1750, %v1747, %v1492
          %vm1752 = vcmp.lt.s32.totalorder %v1749, %v1494
          %v1753 = vsel %vm1752, %v1749, %v1494
          %vm1754 = vcmp.lt.s32.totalorder %v1751, %v1496
          %v1755 = vsel %vm1754, %v1751, %v1496
          %vm1756 = vcmp.lt.s32.totalorder %v1753, %v1498
          %v1757 = vsel %vm1756, %v1753, %v1498
          %vm1758 = vcmp.lt.s32.totalorder %v1755, %v1500
          %v1759 = vsel %vm1758, %v1755, %v1500
          %vm1760 = vcmp.lt.s32.totalorder %v1757, %v1502
          %v1761 = vsel %vm1760, %v1757, %v1502
          %vm1762 = vcmp.lt.s32.totalorder %v1759, %v1504
          %v1763 = vsel %vm1762, %v1759, %v1504
          %vm1764 = vcmp.lt.s32.totalorder %v1761, %v1506
          %v1765 = vsel %vm1764, %v1761, %v1506
          %vm1766 = vcmp.lt.s32.totalorder %v1763, %v1508
          %v1767 = vsel %vm1766, %v1763, %v1508
          %vm1768 = vcmp.lt.s32.totalorder %v1765, %v1510
          %v1769 = vsel %vm1768, %v1765, %v1510
          %vm1770 = vcmp.lt.s32.totalorder %v1767, %v1512
          %v1771 = vsel %vm1770, %v1767, %v1512
          %vm1772 = vcmp.lt.s32.totalorder %v1769, %v1514
          %v1773 = vsel %vm1772, %v1769, %v1514
          %vm1774 = vcmp.lt.s32.totalorder %v1771, %v1516
          %v1775 = vsel %vm1774, %v1771, %v1516
          %vm1776 = vcmp.lt.s32.totalorder %v1773, %v1518
          %v1777 = vsel %vm1776, %v1773, %v1518
          %vm1778 = vcmp.lt.s32.totalorder %v1775, %v1520
          %v1779 = vsel %vm1778, %v1775, %v1520
          %vm1780 = vcmp.lt.s32.totalorder %v1777, %v1522
          %v1781 = vsel %vm1780, %v1777, %v1522
          %vm1782 = vcmp.lt.s32.totalorder %v1779, %v1524
          %v1783 = vsel %vm1782, %v1779, %v1524
          %vm1784 = vcmp.lt.s32.totalorder %v1781, %v1526
          %v1785 = vsel %vm1784, %v1781, %v1526
          %vm1786 = vcmp.lt.s32.totalorder %v1783, %v1528
          %v1787 = vsel %vm1786, %v1783, %v1528
          %vm1788 = vcmp.lt.s32.totalorder %v1785, %v1530
          %v1789 = vsel %vm1788, %v1785, %v1530
          %vm1790 = vcmp.lt.s32.totalorder %v1787, %v1532
          %v1791 = vsel %vm1790, %v1787, %v1532
          %vm1792 = vcmp.lt.s32.totalorder %v1789, %v1534
          %v1793 = vsel %vm1792, %v1789, %v1534
          %vm1794 = vcmp.lt.s32.totalorder %v1791, %v1536
          %v1795 = vsel %vm1794, %v1791, %v1536
          %vm1796 = vcmp.lt.s32.totalorder %v1793, %v1538
          %v1797 = vsel %vm1796, %v1793, %v1538
          %vm1798 = vcmp.lt.s32.totalorder %v1795, %v1540
          %v1799 = vsel %vm1798, %v1795, %v1540
          %vm1800 = vcmp.lt.s32.totalorder %v1797, %v1542
          %v1801 = vsel %vm1800, %v1797, %v1542
          %vm1802 = vcmp.lt.s32.totalorder %v1799, %v1544
          %v1803 = vsel %vm1802, %v1799, %v1544
          %vm1804 = vcmp.lt.s32.totalorder %v1801, %v1546
          %v1805 = vsel %vm1804, %v1801, %v1546
          %vm1806 = vcmp.lt.s32.totalorder %v1803, %v1548
          %v1807 = vsel %vm1806, %v1803, %v1548
          %vm1808 = vcmp.lt.s32.totalorder %v1805, %v1550
          %v1809 = vsel %vm1808, %v1805, %v1550
          %vm1810 = vcmp.lt.s32.totalorder %v1807, %v1552
          %v1811 = vsel %vm1810, %v1807, %v1552
          %vm1812 = vcmp.lt.s32.totalorder %v1809, %v1554
          %v1813 = vsel %vm1812, %v1809, %v1554
          %vm1814 = vcmp.lt.s32.totalorder %v1811, %v1556
          %v1815 = vsel %vm1814, %v1811, %v1556
          %vm1816 = vcmp.lt.s32.totalorder %v1813, %v1558
          %v1817 = vsel %vm1816, %v1813, %v1558
          %vm1818 = vcmp.lt.s32.totalorder %v1815, %v1560
          %v1819 = vsel %vm1818, %v1815, %v1560
          %vm1820 = vcmp.lt.s32.totalorder %v1817, %v1562
          %v1821 = vsel %vm1820, %v1817, %v1562
          %vm1822 = vcmp.lt.s32.totalorder %v1819, %v1564
          %v1823 = vsel %vm1822, %v1819, %v1564
          %vm1824 = vcmp.lt.s32.totalorder %v1821, %v1566
          %v1825 = vsel %vm1824, %v1821, %v1566
          %vm1826 = vcmp.lt.s32.totalorder %v1823, %v1568
          %v1827 = vsel %vm1826, %v1823, %v1568
          %vm1828 = vcmp.lt.s32.totalorder %v1825, %v1570
          %v1829 = vsel %vm1828, %v1825, %v1570
          %vm1830 = vcmp.lt.s32.totalorder %v1827, %v1572
          %v1831 = vsel %vm1830, %v1827, %v1572
          %vm1832 = vcmp.lt.s32.totalorder %v1829, %v1574
          %v1833 = vsel %vm1832, %v1829, %v1574
          %vm1834 = vcmp.lt.s32.totalorder %v1831, %v1576
          %v1835 = vsel %vm1834, %v1831, %v1576
          %vm1836 = vcmp.lt.s32.totalorder %v1833, %v1578
          %v1837 = vsel %vm1836, %v1833, %v1578
          %vm1838 = vcmp.lt.s32.totalorder %v1835, %v1580
          %v1839 = vsel %vm1838, %v1835, %v1580
          %vm1840 = vcmp.lt.s32.totalorder %v1837, %v1582
          %v1841 = vsel %vm1840, %v1837, %v1582
          %vm1842 = vcmp.lt.s32.totalorder %v1839, %v1584
          %v1843 = vsel %vm1842, %v1839, %v1584
          %vm1844 = vcmp.lt.s32.totalorder %v1841, %v1586
          %v1845 = vsel %vm1844, %v1841, %v1586
          %vm1846 = vcmp.lt.s32.totalorder %v1843, %v1588
          %v1847 = vsel %vm1846, %v1843, %v1588
          %vm1848 = vcmp.lt.s32.totalorder %v1845, %v1590
          %v1849 = vsel %vm1848, %v1845, %v1590
          %vm1850 = vcmp.lt.s32.totalorder %v1847, %v1592
          %v1851 = vsel %vm1850, %v1847, %v1592
          %vm1852 = vcmp.lt.s32.totalorder %v1849, %v1594
          %v1853 = vsel %vm1852, %v1849, %v1594
          %vm1854 = vcmp.lt.s32.totalorder %v1851, %v1596
          %v1855 = vsel %vm1854, %v1851, %v1596
          %vm1856 = vcmp.lt.s32.totalorder %v1853, %v1598
          %v1857 = vsel %vm1856, %v1853, %v1598
          %vm1858 = vcmp.lt.s32.totalorder %v1855, %v1600
          %v1859 = vsel %vm1858, %v1855, %v1600
          %vm1860 = vcmp.lt.s32.totalorder %v1857, %v1859
          %v1861 = vsel %vm1860, %v1857, %v1859
          %v1862 = vrot.slane %v1861, 4
          %vm1863 = vcmp.lt.s32.totalorder %v1861, %v1862
          %v1864 = vsel %vm1863, %v1861, %v1862
          %v1865 = vrot.slane %v1864, 2
          %vm1866 = vcmp.lt.s32.totalorder %v1864, %v1865
          %v1867 = vsel %vm1866, %v1864, %v1865
          %v1868 = vrot.slane %v1867, 1
          %vm1869 = vcmp.lt.s32.totalorder %v1867, %v1868
          %v1870 = vsel %vm1869, %v1867, %v1868
          %vm1871 = vcmp.eq.s32.totalorder %v1735, 2147483647
          %vm1872 = vcmp.eq.s32.totalorder %v1870, 2147483647
          %v1873 = vsel %vm1871, 0, %v1735
          %v1874 = vsel %vm1872, 0, %v1870
          %v1875 = vcombine.low %v1873, %v1874
          %v1877 = vunpack.c.l.s4 1966171168
          %v1878 = vunpack.c.0.s8 %v1877
          %v1879 = vlaneseq
          %v1880 = vshrl.u32 %v1879, 7
          %v1881 = vsub.s32 %v1878, %v1880
          %v1882 = vrot.slane %v1875, %v1881
          %v1884 = vunpack.c.l.s4 1966171168
          %v1885 = vunpack.c.0.s8 %v1884
          %v1886 = vlaneseq
          %v1887 = vshrl.u32 %v1886, 7
          %v1888 = vsub.s32 %v1885, %v1887
          %v1889 = vrot.slane %v1882, %v1888
          %v1890 = vlaneseq
          %vm1891 = vcmp.ge.s32.totalorder %v1890, 0
          %vm1892 = vcmp.lt.s32.totalorder %v1890, 256
          %vm1893 = vmand %vm1891, %vm1892
          %1894 = vst.msk [vmem:[%s162] sm:$0x3] %vm1893, %v1889
        $region36: #{tpu_custom_call.1} parent=27 // pred_fallthru
          _
        %s1895 = sand.u32 %s88, 1
        %s1896 = scalar_lea.sflag [#allocation4], %s1895
        %s1897 = sand.u32 %s88, 1
        %s1898 = smul.addr %s1897, 2
        %s1899 = scalar_lea.vmem [#allocation3], %s1898
        // Predicated region
        $region37: #{tpu_custom_call.1} parent=27 // pred_check
          %p1900 = pneg %p98
        $region38: #{tpu_custom_call.1} parent=27 // pred_check_branch
          %1902 = sbr.rel (%p1900) target = $region40
        $region39: #{tpu_custom_call.1} parent=27 // pred_region
          %s1904 = ssub.s32 32, 32
          %1905 = vsyncadd %s1896, %s1904
          %s1906 = smul.addr %s20, 2
          %s1907 = smul.addr %s1906, 16
          %s1908 = scalar_lea.hbm %s2, %s1907
          %s1910 = sshll.u32 %s1899, 4
          %s1911 = int_to_ptr.vmem [resolvable:$true] %s1910
          %1913 = dma.vmem_to_hbm [thread:$0]  %s1911, 32, %s1908, %s1896
        $region40: #{tpu_custom_call.1} parent=27 // pred_fallthru
          _
      $region28: #{tpu_custom_call.1} parent=5 // pred_fallthru
        _
      %p1914 = scmp.le.s32.totalorder 2, %s11
      // Predicated region
      $region41: #{tpu_custom_call.1} parent=5 // pred_check
        %p1915 = pneg %p1914
      $region42: #{tpu_custom_call.1} parent=5 // pred_check_branch
        %1917 = sbr.rel (%p1915) target = $region44
      $region43: #{tpu_custom_call.1} parent=5 // pred_region
        %s1918 = ssub.s32 %s11, 2
        // Predicated region
        $region45: #{tpu_custom_call.1} parent=43 // pred_check
          %p1919 = pneg %p104
        $region46: #{tpu_custom_call.1} parent=43 // pred_check_branch
          %1921 = sbr.rel (%p1919) target = $region48
        $region47: #{tpu_custom_call.1} parent=43 // pred_region
          %s1922 = sand.u32 %s89, 1
          %s1923 = scalar_lea.sflag [#allocation4], %s1922
          %s1924 = sand.u32 %s89, 1
          %s1925 = smul.addr %s1924, 2
          %s1926 = scalar_lea.vmem [#allocation3], %s1925
          %1927 = dma.done %s1923, 32
        $region48: #{tpu_custom_call.1} parent=43 // pred_fallthru
          _
      $region44: #{tpu_custom_call.1} parent=5 // pred_fallthru
        _
    $region6: #{tpu_custom_call.1} parent=1 // loop_footer
      %s15 = sadd.s32 1, %s11
    $region7: #{tpu_custom_call.1} parent=1 // loop_footer_branch
      %10 = sbr.rel target = $region3
    $region8: #{tpu_custom_call.1} parent=1 // loop_exit
      _
    %1928 = vsyncpa [#allocation4], 1
    %s1929 = scalar_lea.sflag [#allocation4], 1
    %1930 = vsyncpa %s1929, 1

</llo_original>
